<compile_context>
chip_gen: v6e
topology: v6e:2x2x1
jax: 0.10.0
libtpu: 0.0.40
codegen_flags: <defaults>
</compile_context>

<pallas_src>
import functools

import jax
import jax.numpy as jnp
from jax import lax
from jax.experimental import pallas as pl
from jax.experimental.pallas import tpu as pltpu


# ----------------------------- small helpers --------------------------------

def _row(v):
    return v.reshape(1, -1).astype(jnp.float32)


def _group_matrix(c, groups):
    # (C, C) 0/1 matrix: gm[i, j] = 1 iff channels i and j share a GroupNorm
    # group.  Precomputed once outside the kernel (no per-step C^2 compares).
    g = jnp.arange(c, dtype=jnp.int32) // (c // groups)
    return (g[:, None] == g[None, :]).astype(jnp.float32)


def _fold3x3(w):
    # (Cout, Cin, 3, 3) -> (9*Cin, Cout); row order (kh, kw, ci) matches the
    # in-kernel im2col column order.
    cout, cin = w.shape[0], w.shape[1]
    return jnp.transpose(w, (2, 3, 1, 0)).reshape(9 * cin, cout)


def _cparams(block_bytes):
    # Explicit scoped-VMEM limit: x2 for BlockSpec double-buffering, x2 extra
    # headroom for the in-kernel im2col / f32 accumulator temporaries.
    need = 4 * int(block_bytes) + (8 << 20)
    return pltpu.CompilerParams(
        dimension_semantics=("parallel",),
        vmem_limit_bytes=int(min(100 << 20, max(16 << 20, need))))


# ----------------------------- in-kernel helpers ----------------------------

def _gn_silu(acc, gamma_ref, beta_ref, gm_ref, rows, cout, groups, eps):
    # GroupNorm (biased variance over spatial x channels-in-group, f32 stats),
    # then SiLU.  `acc` is (rows, cout) f32, channels on lanes.
    cg = cout // groups
    n = float(rows * cg)
    gm = gm_ref[...]
    mean = jnp.dot(jnp.sum(acc, axis=0, keepdims=True), gm,
                   preferred_element_type=jnp.float32) / n
    d = acc - mean
    var = jnp.dot(jnp.sum(d * d, axis=0, keepdims=True), gm,
                  preferred_element_type=jnp.float32) / n
    y = d * lax.rsqrt(var + eps) * gamma_ref[...] + beta_ref[...]
    return y * jax.nn.sigmoid(y)


# --------------------------------- kernels ----------------------------------

def _upsample_kernel(x_ref, w_ref, b_ref, o_ref, *, H, W, cin, cout):
    # ConvTranspose2d(k=4, s=2, p=1) via sub-pixel decomposition: output parity
    # (r, s) is a 2x2 conv of the (pad-1) input.  The 4 taps are folded into a
    # single K = 4*cin MXU dot per parity (no structural-zero MACs, no serial
    # accumulate chain).
    # x_ref: (1, H+2, W+2, cin) bf16 ; w_ref: (2, 2, 4*cin, cout) bf16
    # o_ref: (1, H, 2, W, 2*cout) bf16  (free reshape to (2H, 2W, cout)).
    for r in (0, 1):
        subs = []
        for s in (0, 1):
            im = jnp.concatenate(
                [x_ref[0, r + dh:r + dh + H, s + dw:s + dw + W, :]
                 for dh in (0, 1) for dw in (0, 1)], axis=-1)
            acc = jnp.dot(im.reshape(H * W, 4 * cin), w_ref[r, s],
                          preferred_element_type=jnp.float32) + b_ref[...]
            subs.append(acc.reshape(H, W, cout))
        o_ref[0, :, r, :, :] = jnp.concatenate(subs, axis=-1).astype(o_ref.dtype)


def _block1_kernel(skip_ref, up_ref, w_ref, b_ref, g_ref, bt_ref, gm_ref,
                   temb_ref, o_ref, *, H, W, cs, cu, cout, groups, eps):
    # ConvBlock1: conv3x3 + bias + GroupNorm + SiLU fused with the per-channel
    # time-embedding add.  cat([skip, up]) is never materialized: the
    # contraction is split over the two padded operands and folded into one
    # K = 9*(cs+cu) dot.
    taps = ([skip_ref[0, kh:kh + H, kw:kw + W, :]
             for kh in range(3) for kw in range(3)]
            + [up_ref[0, kh:kh + H, kw:kw + W, :]
               for kh in range(3) for kw in range(3)])
    im = jnp.concatenate(taps, axis=-1).reshape(H * W, 9 * (cs + cu))
    acc = jnp.dot(im, w_ref[...], preferred_element_type=jnp.float32) + b_ref[...]
    y = _gn_silu(acc, g_ref, bt_ref, gm_ref, H * W, cout, groups, eps)
    y = y + temb_ref[0]                                    # (1, cout) broadcast
    o_ref[0] = y.reshape(H, W, cout).astype(o_ref.dtype)


def _block2_res_kernel(h_ref, w_ref, b_ref, g_ref, bt_ref, gm_ref, skip_ref,
                       up_ref, rws_ref, rwu_ref, rb_ref, o_ref, *,
                       H, W, cout, cs, cu, groups, eps):
    # ConvBlock2 (conv3x3 + bias + GroupNorm + SiLU, single K = 9*cout dot)
    # fused with res_conv(h_in) + residual add; h_in is again read as separate
    # skip / up slabs (interiors of the already-padded block1 inputs).
    im = jnp.concatenate(
        [h_ref[0, kh:kh + H, kw:kw + W, :] for kh in range(3) for kw in range(3)],
        axis=-1).reshape(H * W, 9 * cout)
    acc = jnp.dot(im, w_ref[...], preferred_element_type=jnp.float32) + b_ref[...]
    y = _gn_silu(acc, g_ref, bt_ref, gm_ref, H * W, cout, groups, eps)
    res = (jnp.dot(skip_ref[0, 1:1 + H, 1:1 + W, :].reshape(H * W, cs),
                   rws_ref[...], preferred_element_type=jnp.float32)
           + jnp.dot(up_ref[0, 1:1 + H, 1:1 + W, :].reshape(H * W, cu),
                     rwu_ref[...], preferred_element_type=jnp.float32)
           + rb_ref[...])
    o_ref[0] = (y + res).reshape(H, W, cout).astype(o_ref.dtype)


# ------------------------------ Pallas wrappers ------------------------------

def upsample_conv_transpose(x_nhwc, w, b):
    """PyTorch ConvTranspose2d(Cin, Cout, 4, stride=2, padding=1), NHWC in/out."""
    B, H, W, Cin = x_nhwc.shape
    Cout = w.shape[1]
    xp = jnp.pad(x_nhwc.astype(jnp.bfloat16), ((0, 0), (1, 1), (1, 1), (0, 0)))
    TAP = ((3, 1), (2, 0))
    # (2, 2, 4*Cin, Cout): per-parity folded weights, tap order (dh, dw).
    wf = jnp.stack([
        jnp.stack([
            jnp.concatenate([w[:, :, TAP[r][dh], TAP[s][dw]]
                             for dh in (0, 1) for dw in (0, 1)], axis=0)
            for s in (0, 1)], axis=0)
        for r in (0, 1)], axis=0).astype(jnp.bfloat16)

    blk_bytes = ((H + 2) * (W + 2) * Cin * 2 + 16 * Cin * Cout * 2
                 + 4 * H * W * Cout * 2 + 4 * Cout)
    cost = pl.CostEstimate(
        flops=2 * B * H * W * 4 * (4 * Cin) * Cout,
        transcendentals=0,
        bytes_accessed=B * ((H + 2) * (W + 2) * Cin * 2 + 4 * H * W * Cout * 2)
                       + 16 * Cin * Cout * 2)
    out = pl.pallas_call(
        functools.partial(_upsample_kernel, H=H, W=W, cin=Cin, cout=Cout),
        grid=(B,),
        in_specs=[
            pl.BlockSpec((1, H + 2, W + 2, Cin), lambda i: (i, 0, 0, 0)),
            pl.BlockSpec((2, 2, 4 * Cin, Cout), lambda i: (0, 0, 0, 0)),
            pl.BlockSpec((1, Cout), lambda i: (0, 0)),
        ],
        out_specs=pl.BlockSpec((1, H, 2, W, 2 * Cout), lambda i: (i, 0, 0, 0, 0)),
        out_shape=jax.ShapeDtypeStruct((B, H, 2, W, 2 * Cout), jnp.bfloat16),
        compiler_params=_cparams(blk_bytes),
        cost_estimate=cost,
    )(xp, wf, _row(b))
    # (B, H, 2, W, 2*Cout) -> (B, 2H, 2W, Cout): contiguity-preserving reshape.
    return out.reshape(B, 2 * H, 2 * W, Cout)


def conv_block1(skip_pad, up_pad, w, b, gamma, beta, gm, temb_out, groups,
                eps=1e-5):
    B, Hp, Wp, Cs = skip_pad.shape
    Cu = up_pad.shape[-1]
    H, W = Hp - 2, Wp - 2
    Cout = w.shape[0]
    wf = jnp.concatenate([_fold3x3(w[:, :Cs]), _fold3x3(w[:, Cs:])],
                         axis=0).astype(jnp.bfloat16)        # (9*(Cs+Cu), Cout)
    temb3 = temb_out.reshape(B, 1, Cout).astype(jnp.float32)

    blk_bytes = (Hp * Wp * (Cs + Cu) * 2 + 9 * (Cs + Cu) * Cout * 2
                 + H * W * Cout * 2 + Cout * Cout * 4)
    cost = pl.CostEstimate(
        flops=2 * B * H * W * 9 * (Cs + Cu) * Cout,
        transcendentals=B * H * W * Cout,
        bytes_accessed=B * (Hp * Wp * (Cs + Cu) * 2 + H * W * Cout * 2)
                       + 9 * (Cs + Cu) * Cout * 2)
    return pl.pallas_call(
        functools.partial(_block1_kernel, H=H, W=W, cs=Cs, cu=Cu, cout=Cout,
                          groups=groups, eps=eps),
        grid=(B,),
        in_specs=[
            pl.BlockSpec((1, Hp, Wp, Cs), lambda i: (i, 0, 0, 0)),
            pl.BlockSpec((1, Hp, Wp, Cu), lambda i: (i, 0, 0, 0)),
            pl.BlockSpec((9 * (Cs + Cu), Cout), lambda i: (0, 0)),
            pl.BlockSpec((1, Cout), lambda i: (0, 0)),
            pl.BlockSpec((1, Cout), lambda i: (0, 0)),
            pl.BlockSpec((1, Cout), lambda i: (0, 0)),
            pl.BlockSpec((Cout, Cout), lambda i: (0, 0)),
            pl.BlockSpec((1, 1, Cout), lambda i: (i, 0, 0)),
        ],
        out_specs=pl.BlockSpec((1, H, W, Cout), lambda i: (i, 0, 0, 0)),
        out_shape=jax.ShapeDtypeStruct((B, H, W, Cout), jnp.bfloat16),
        compiler_params=_cparams(blk_bytes),
        cost_estimate=cost,
    )(skip_pad, up_pad, wf, _row(b), _row(gamma), _row(beta), gm, temb3)


def conv_block2_residual(h, w, b, gamma, beta, gm, skip_pad, up_pad, rc_w, rc_b,
                         groups, eps=1e-5):
    B, H, W, Cin = h.shape                      # Cin == Cout for block2
    Cout = w.shape[0]
    Cs = skip_pad.shape[-1]
    Cu = up_pad.shape[-1]
    hp = jnp.pad(h, ((0, 0), (1, 1), (1, 1), (0, 0)))
    wf = _fold3x3(w).astype(jnp.bfloat16)                     # (9*Cin, Cout)
    rws = rc_w[:, :Cs, 0, 0].T.astype(jnp.bfloat16)           # (Cs, Cout)
    rwu = rc_w[:, Cs:, 0, 0].T.astype(jnp.bfloat16)           # (Cu, Cout)

    blk_bytes = ((H + 2) * (W + 2) * (Cin + Cs + Cu) * 2
                 + 9 * Cin * Cout * 2 + H * W * Cout * 4 + Cout * Cout * 4)
    cost = pl.CostEstimate(
        flops=2 * B * H * W * (9 * Cin + Cs + Cu) * Cout,
        transcendentals=B * H * W * Cout,
        bytes_accessed=B * ((H + 2) * (W + 2) * (Cin + Cs + Cu) * 2
                            + H * W * Cout * 4) + 9 * Cin * Cout * 2)
    return pl.pallas_call(
        functools.partial(_block2_res_kernel, H=H, W=W, cout=Cout, cs=Cs, cu=Cu,
                          groups=groups, eps=eps),
        grid=(B,),
        in_specs=[
            pl.BlockSpec((1, H + 2, W + 2, Cin), lambda i: (i, 0, 0, 0)),
            pl.BlockSpec((9 * Cin, Cout), lambda i: (0, 0)),
            pl.BlockSpec((1, Cout), lambda i: (0, 0)),
            pl.BlockSpec((1, Cout), lambda i: (0, 0)),
            pl.BlockSpec((1, Cout), lambda i: (0, 0)),
            pl.BlockSpec((Cout, Cout), lambda i: (0, 0)),
            pl.BlockSpec((1, H + 2, W + 2, Cs), lambda i: (i, 0, 0, 0)),
            pl.BlockSpec((1, H + 2, W + 2, Cu), lambda i: (i, 0, 0, 0)),
            pl.BlockSpec((Cs, Cout), lambda i: (0, 0)),
            pl.BlockSpec((Cu, Cout), lambda i: (0, 0)),
            pl.BlockSpec((1, Cout), lambda i: (0, 0)),
        ],
        out_specs=pl.BlockSpec((1, H, W, Cout), lambda i: (i, 0, 0, 0)),
        # TODO(synk): on mem-bound v5e, write bf16 here too if the f32 output
        # is not contractually required downstream.
        out_shape=jax.ShapeDtypeStruct((B, H, W, Cout), jnp.float32),
        compiler_params=_cparams(blk_bytes),
        cost_estimate=cost,
    )(hp, wf, _row(b), _row(gamma), _row(beta), gm, skip_pad, up_pad,
      rws, rwu, _row(rc_b))


# ------------------------------ UpBlock forward ------------------------------

def upblock_forward(params, x, skip_x, time_emb, groups=8):
    # Public contract is NCHW (PyTorch); internals are NHWC / lane-dense.
    x_n = jnp.transpose(x, (0, 2, 3, 1))
    skip_n = jnp.transpose(skip_x, (0, 2, 3, 1)).astype(jnp.bfloat16)

    up = upsample_conv_transpose(x_n, params["up_w"], params["up_b"])

    # Padded skip / up slabs are materialized once (bf16) and shared by block1
    # (3x3 windows) and block2 (1x1 residual on the interior); the concatenated
    # h_in never exists in HBM.
    skip_pad = jnp.pad(skip_n, ((0, 0), (1, 1), (1, 1), (0, 0)))
    up_pad = jnp.pad(up, ((0, 0), (1, 1), (1, 1), (0, 0)))

    # Tiny time MLP: plain jnp ops, fused by XLA (no extra pallas_call launch).
    temb_out = (jax.nn.silu(time_emb.astype(jnp.float32))
                @ params["mlp_w"].T.astype(jnp.float32)
                + params["mlp_b"].astype(jnp.float32))

    cout = params["c1_w"].shape[0]
    assert cout % groups == 0, "GroupNorm requires out_channels % groups == 0"
    gm = _group_matrix(cout, groups)

    h = conv_block1(skip_pad, up_pad, params["c1_w"], params["c1_b"],
                    params["g1_w"], params["g1_b"], gm, temb_out, groups)
    out = conv_block2_residual(h, params["c2_w"], params["c2_b"],
                               params["g2_w"], params["g2_b"], gm,
                               skip_pad, up_pad, params["rc_w"], params["rc_b"],
                               groups)
    return jnp.transpose(out, (0, 3, 1, 2))


# -------------------------- pure-JAX reference (check) -----------------------

def ref_forward(params, x, skip_x, time_emb, groups=8, eps=1e-5):
    dn = ("NCHW", "OIHW", "NCHW")

    w2 = jnp.flip(params["up_w"], axis=(2, 3)).transpose(1, 0, 2, 3)
    xu = lax.conv_general_dilated(x, w2, (1, 1), [(2, 2), (2, 2)],
                                  lhs_dilation=(2, 2), dimension_numbers=dn)
    xu = xu + params["up_b"][None, :, None, None]
    h_in = jnp.concatenate([skip_x, xu], axis=1)

    t = jax.nn.silu(time_emb) @ params["mlp_w"].T + params["mlp_b"]

    def gn(z, g, b):
        B, C, H, W = z.shape
        zg = z.reshape(B, groups, -1)
        m = zg.mean(-1, keepdims=True)
        v = ((zg - m) ** 2).mean(-1, keepdims=True)
        zn = ((zg - m) / jnp.sqrt(v + eps)).reshape(B, C, H, W)
        return zn * g[None, :, None, None] + b[None, :, None, None]

    h = lax.conv_general_dilated(h_in, params["c1_w"], (1, 1), [(1, 1), (1, 1)],
                                 dimension_numbers=dn) + params["c1_b"][None, :, None, None]
    h = jax.nn.silu(gn(h, params["g1_w"], params["g1_b"]))
    h = h + t[:, :, None, None]
    h = lax.conv_general_dilated(h, params["c2_w"], (1, 1), [(1, 1), (1, 1)],
                                 dimension_numbers=dn) + params["c2_b"][None, :, None, None]
    h = jax.nn.silu(gn(h, params["g2_w"], params["g2_b"]))
    res = lax.conv_general_dilated(h_in, params["rc_w"], (1, 1), [(0, 0), (0, 0)],
                                   dimension_numbers=dn) + params["rc_b"][None, :, None, None]
    return h + res


# --------------------------------- params ------------------------------------

def init_params(key, in_channels, skip_channels, out_channels, time_emb_dim):
    # TODO(synk): the original ResnetBlock(in_channels + skip_channels, ...) is
    # shape-inconsistent with UpBlock.forward's actual data flow (the concat has
    # in_channels//2 + skip_channels channels); parameters here follow the data
    # flow so the forward pass is executable.
    c_cat = in_channels // 2 + skip_channels
    ks = jax.random.split(key, 14)

    def n(k, shape, scale=0.1):
        return scale * jax.random.normal(k, shape, jnp.float32)

    return dict(
        up_w=n(ks[0], (in_channels, in_channels // 2, 4, 4)),
        up_b=n(ks[1], (in_channels // 2,)),
        mlp_w=n(ks[2], (out_channels, time_emb_dim)),
        mlp_b=n(ks[3], (out_channels,)),
        c1_w=n(ks[4], (out_channels, c_cat, 3, 3)),
        c1_b=n(ks[5], (out_channels,)),
        g1_w=1.0 + n(ks[6], (out_channels,)),
        g1_b=n(ks[7], (out_channels,)),
        c2_w=n(ks[8], (out_channels, out_channels, 3, 3)),
        c2_b=n(ks[9], (out_channels,)),
        g2_w=1.0 + n(ks[10], (out_channels,)),
        g2_b=n(ks[11], (out_channels,)),
        rc_w=n(ks[12], (out_channels, c_cat, 1, 1)),
        rc_b=n(ks[13], (out_channels,)),
    )


if __name__ == "__main__":
    key = jax.random.PRNGKey(0)
    kp, kx, ksk, kt = jax.random.split(key, 4)

    B, in_ch, H, W = 2, 8, 8, 8
    skip_ch, out_ch, tdim, groups = 4, 16, 32, 8

    params = init_params(kp, in_ch, skip_ch, out_ch, tdim)
    x = jax.random.normal(kx, (B, in_ch, H, W), jnp.float32)
    skip_x = jax.random.normal(ksk, (B, skip_ch, 2 * H, 2 * W), jnp.float32)
    time_emb = jax.random.normal(kt, (B, tdim), jnp.float32)

    out = jax.block_until_ready(upblock_forward(params, x, skip_x, time_emb, groups))
    ref = ref_forward(params, x, skip_x, time_emb, groups)

    assert out.shape == (B, out_ch, 2 * H, 2 * W), out.shape
    # bf16 matmul operands / bf16 inter-kernel activations (f32 accumulation and
    # f32 GroupNorm statistics) => tolerance is bf16-level, not f32-level.
    err = float(jnp.max(jnp.abs(out - ref)))
    assert jnp.allclose(out, ref, atol=6e-2, rtol=6e-2), f"max abs err {err}"

    print("KERNEL_OK")
</pallas_src>

<mosaic_0001>
module attributes {stable_mosaic.version = 11 : i64} {
  func.func @_upsample_kernel(%arg0: i32, %arg1: memref<1x10x10x8xbf16, #tpu.memory_space<vmem>>, %arg2: memref<2x2x32x4xbf16, #tpu.memory_space<vmem>>, %arg3: memref<1x4xf32, #tpu.memory_space<vmem>>, %arg4: memref<1x8x2x8x8xbf16, #tpu.memory_space<vmem>>) attributes {dimension_semantics = [#tpu.dimension_semantics<parallel>], iteration_bounds = array<i64: 2>, scalar_prefetch = 0 : i64, scratch_operands = 0 : i64, tpu.core_type = #tpu.core_type<tc>, window_params = [{transform_indices = @transform_0, window_bounds = array<i64: 1, 10, 10, 8>}, {pipeline_mode = #tpu.pipeline_mode<synchronous>, transform_indices = @transform_1, window_bounds = array<i64: 2, 2, 32, 4>}, {pipeline_mode = #tpu.pipeline_mode<synchronous>, transform_indices = @transform_2, window_bounds = array<i64: 1, 4>}, {transform_indices = @transform_3, window_bounds = array<i64: 1, 8, 2, 8, 8>}]} {
    %c0 = arith.constant 0 : index
    %c0_0 = arith.constant 0 : index
    %c0_1 = arith.constant 0 : index
    %c0_2 = arith.constant 0 : index
    %0 = vector.load %arg1[%c0, %c0_0, %c0_1, %c0_2] : memref<1x10x10x8xbf16, #tpu.memory_space<vmem>>, vector<1x8x8x8xbf16>
    %1 = vector.shape_cast %0 : vector<1x8x8x8xbf16> to vector<8x8x8xbf16>
    %c0_3 = arith.constant 0 : index
    %c0_4 = arith.constant 0 : index
    %c1 = arith.constant 1 : index
    %c0_5 = arith.constant 0 : index
    %2 = vector.load %arg1[%c0_3, %c0_4, %c1, %c0_5] : memref<1x10x10x8xbf16, #tpu.memory_space<vmem>>, vector<1x8x8x8xbf16>
    %3 = vector.shape_cast %2 : vector<1x8x8x8xbf16> to vector<8x8x8xbf16>
    %c0_6 = arith.constant 0 : index
    %c1_7 = arith.constant 1 : index
    %c0_8 = arith.constant 0 : index
    %c0_9 = arith.constant 0 : index
    %4 = vector.load %arg1[%c0_6, %c1_7, %c0_8, %c0_9] : memref<1x10x10x8xbf16, #tpu.memory_space<vmem>>, vector<1x8x8x8xbf16>
    %5 = vector.shape_cast %4 : vector<1x8x8x8xbf16> to vector<8x8x8xbf16>
    %c0_10 = arith.constant 0 : index
    %c1_11 = arith.constant 1 : index
    %c1_12 = arith.constant 1 : index
    %c0_13 = arith.constant 0 : index
    %6 = vector.load %arg1[%c0_10, %c1_11, %c1_12, %c0_13] : memref<1x10x10x8xbf16, #tpu.memory_space<vmem>>, vector<1x8x8x8xbf16>
    %7 = vector.shape_cast %6 : vector<1x8x8x8xbf16> to vector<8x8x8xbf16>
    %8 = tpu.concatenate %1, %3, %5, %7 in 2 : vector<8x8x8xbf16>, vector<8x8x8xbf16>, vector<8x8x8xbf16>, vector<8x8x8xbf16> -> vector<8x8x32xbf16>
    %9 = vector.shape_cast %8 : vector<8x8x32xbf16> to vector<64x32xbf16>
    %c0_14 = arith.constant 0 : index
    %c0_15 = arith.constant 0 : index
    %c0_16 = arith.constant 0 : index
    %c0_17 = arith.constant 0 : index
    %10 = vector.load %arg2[%c0_14, %c0_15, %c0_16, %c0_17] : memref<2x2x32x4xbf16, #tpu.memory_space<vmem>>, vector<1x1x32x4xbf16>
    %11 = vector.shape_cast %10 : vector<1x1x32x4xbf16> to vector<32x4xbf16>
    %cst = arith.constant dense<0.000000e+00> : vector<64x4xf32>
    %12 = tpu.matmul %9, %11, %cst {dimension_numbers = #tpu.dot_dimension_numbers<[1], [0], [0], [1], [0, 0, 1, 1], [], []>} : vector<64x32xbf16>, vector<32x4xbf16>, vector<64x4xf32> -> vector<64x4xf32>
    %c0_18 = arith.constant 0 : index
    %c0_19 = arith.constant 0 : index
    %13 = vector.load %arg3[%c0_18, %c0_19] : memref<1x4xf32, #tpu.memory_space<vmem>>, vector<1x4xf32>
    %14 = vector.broadcast %13 : vector<1x4xf32> to vector<64x4xf32>
    %15 = arith.addf %12, %14 : vector<64x4xf32>
    %16 = vector.shape_cast %15 : vector<64x4xf32> to vector<8x8x4xf32>
    %c0_20 = arith.constant 0 : index
    %c0_21 = arith.constant 0 : index
    %c1_22 = arith.constant 1 : index
    %c0_23 = arith.constant 0 : index
    %17 = vector.load %arg1[%c0_20, %c0_21, %c1_22, %c0_23] : memref<1x10x10x8xbf16, #tpu.memory_space<vmem>>, vector<1x8x8x8xbf16>
    %18 = vector.shape_cast %17 : vector<1x8x8x8xbf16> to vector<8x8x8xbf16>
    %c0_24 = arith.constant 0 : index
    %c0_25 = arith.constant 0 : index
    %c2 = arith.constant 2 : index
    %c0_26 = arith.constant 0 : index
    %19 = vector.load %arg1[%c0_24, %c0_25, %c2, %c0_26] : memref<1x10x10x8xbf16, #tpu.memory_space<vmem>>, vector<1x8x8x8xbf16>
    %20 = vector.shape_cast %19 : vector<1x8x8x8xbf16> to vector<8x8x8xbf16>
    %c0_27 = arith.constant 0 : index
    %c1_28 = arith.constant 1 : index
    %c1_29 = arith.constant 1 : index
    %c0_30 = arith.constant 0 : index
    %21 = vector.load %arg1[%c0_27, %c1_28, %c1_29, %c0_30] : memref<1x10x10x8xbf16, #tpu.memory_space<vmem>>, vector<1x8x8x8xbf16>
    %22 = vector.shape_cast %21 : vector<1x8x8x8xbf16> to vector<8x8x8xbf16>
    %c0_31 = arith.constant 0 : index
    %c1_32 = arith.constant 1 : index
    %c2_33 = arith.constant 2 : index
    %c0_34 = arith.constant 0 : index
    %23 = vector.load %arg1[%c0_31, %c1_32, %c2_33, %c0_34] : memref<1x10x10x8xbf16, #tpu.memory_space<vmem>>, vector<1x8x8x8xbf16>
    %24 = vector.shape_cast %23 : vector<1x8x8x8xbf16> to vector<8x8x8xbf16>
    %25 = tpu.concatenate %18, %20, %22, %24 in 2 : vector<8x8x8xbf16>, vector<8x8x8xbf16>, vector<8x8x8xbf16>, vector<8x8x8xbf16> -> vector<8x8x32xbf16>
    %26 = vector.shape_cast %25 : vector<8x8x32xbf16> to vector<64x32xbf16>
    %c0_35 = arith.constant 0 : index
    %c1_36 = arith.constant 1 : index
    %c0_37 = arith.constant 0 : index
    %c0_38 = arith.constant 0 : index
    %27 = vector.load %arg2[%c0_35, %c1_36, %c0_37, %c0_38] : memref<2x2x32x4xbf16, #tpu.memory_space<vmem>>, vector<1x1x32x4xbf16>
    %28 = vector.shape_cast %27 : vector<1x1x32x4xbf16> to vector<32x4xbf16>
    %cst_39 = arith.constant dense<0.000000e+00> : vector<64x4xf32>
    %29 = tpu.matmul %26, %28, %cst_39 {dimension_numbers = #tpu.dot_dimension_numbers<[1], [0], [0], [1], [0, 0, 1, 1], [], []>} : vector<64x32xbf16>, vector<32x4xbf16>, vector<64x4xf32> -> vector<64x4xf32>
    %c0_40 = arith.constant 0 : index
    %c0_41 = arith.constant 0 : index
    %30 = vector.load %arg3[%c0_40, %c0_41] : memref<1x4xf32, #tpu.memory_space<vmem>>, vector<1x4xf32>
    %31 = vector.broadcast %30 : vector<1x4xf32> to vector<64x4xf32>
    %32 = arith.addf %29, %31 : vector<64x4xf32>
    %33 = vector.shape_cast %32 : vector<64x4xf32> to vector<8x8x4xf32>
    %34 = tpu.concatenate %16, %33 in 2 : vector<8x8x4xf32>, vector<8x8x4xf32> -> vector<8x8x8xf32>
    %35 = arith.truncf %34 : vector<8x8x8xf32> to vector<8x8x8xbf16>
    %c0_42 = arith.constant 0 : index
    %c0_43 = arith.constant 0 : index
    %c0_44 = arith.constant 0 : index
    %c0_45 = arith.constant 0 : index
    %c0_46 = arith.constant 0 : index
    %36 = vector.load %arg4[%c0_42, %c0_43, %c0_44, %c0_45, %c0_46] : memref<1x8x2x8x8xbf16, #tpu.memory_space<vmem>>, vector<1x8x1x8x8xbf16>
    %37 = vector.shape_cast %36 : vector<1x8x1x8x8xbf16> to vector<8x8x8xbf16>
    %38 = vector.shape_cast %35 : vector<8x8x8xbf16> to vector<1x8x1x8x8xbf16>
    tpu.vector_store %arg4[%c0_42, %c0_43, %c0_44, %c0_45, %c0_46], %38 {strides = array<i32>} : memref<1x8x2x8x8xbf16, #tpu.memory_space<vmem>>, vector<1x8x1x8x8xbf16>,
    %c0_47 = arith.constant 0 : index
    %c1_48 = arith.constant 1 : index
    %c0_49 = arith.constant 0 : index
    %c0_50 = arith.constant 0 : index
    %39 = vector.load %arg1[%c0_47, %c1_48, %c0_49, %c0_50] : memref<1x10x10x8xbf16, #tpu.memory_space<vmem>>, vector<1x8x8x8xbf16>
    %40 = vector.shape_cast %39 : vector<1x8x8x8xbf16> to vector<8x8x8xbf16>
    %c0_51 = arith.constant 0 : index
    %c1_52 = arith.constant 1 : index
    %c1_53 = arith.constant 1 : index
    %c0_54 = arith.constant 0 : index
    %41 = vector.load %arg1[%c0_51, %c1_52, %c1_53, %c0_54] : memref<1x10x10x8xbf16, #tpu.memory_space<vmem>>, vector<1x8x8x8xbf16>
    %42 = vector.shape_cast %41 : vector<1x8x8x8xbf16> to vector<8x8x8xbf16>
    %c0_55 = arith.constant 0 : index
    %c2_56 = arith.constant 2 : index
    %c0_57 = arith.constant 0 : index
    %c0_58 = arith.constant 0 : index
    %43 = vector.load %arg1[%c0_55, %c2_56, %c0_57, %c0_58] : memref<1x10x10x8xbf16, #tpu.memory_space<vmem>>, vector<1x8x8x8xbf16>
    %44 = vector.shape_cast %43 : vector<1x8x8x8xbf16> to vector<8x8x8xbf16>
    %c0_59 = arith.constant 0 : index
    %c2_60 = arith.constant 2 : index
    %c1_61 = arith.constant 1 : index
    %c0_62 = arith.constant 0 : index
    %45 = vector.load %arg1[%c0_59, %c2_60, %c1_61, %c0_62] : memref<1x10x10x8xbf16, #tpu.memory_space<vmem>>, vector<1x8x8x8xbf16>
    %46 = vector.shape_cast %45 : vector<1x8x8x8xbf16> to vector<8x8x8xbf16>
    %47 = tpu.concatenate %40, %42, %44, %46 in 2 : vector<8x8x8xbf16>, vector<8x8x8xbf16>, vector<8x8x8xbf16>, vector<8x8x8xbf16> -> vector<8x8x32xbf16>
    %48 = vector.shape_cast %47 : vector<8x8x32xbf16> to vector<64x32xbf16>
    %c1_63 = arith.constant 1 : index
    %c0_64 = arith.constant 0 : index
    %c0_65 = arith.constant 0 : index
    %c0_66 = arith.constant 0 : index
    %49 = vector.load %arg2[%c1_63, %c0_64, %c0_65, %c0_66] : memref<2x2x32x4xbf16, #tpu.memory_space<vmem>>, vector<1x1x32x4xbf16>
    %50 = vector.shape_cast %49 : vector<1x1x32x4xbf16> to vector<32x4xbf16>
    %cst_67 = arith.constant dense<0.000000e+00> : vector<64x4xf32>
    %51 = tpu.matmul %48, %50, %cst_67 {dimension_numbers = #tpu.dot_dimension_numbers<[1], [0], [0], [1], [0, 0, 1, 1], [], []>} : vector<64x32xbf16>, vector<32x4xbf16>, vector<64x4xf32> -> vector<64x4xf32>
    %c0_68 = arith.constant 0 : index
    %c0_69 = arith.constant 0 : index
    %52 = vector.load %arg3[%c0_68, %c0_69] : memref<1x4xf32, #tpu.memory_space<vmem>>, vector<1x4xf32>
    %53 = vector.broadcast %52 : vector<1x4xf32> to vector<64x4xf32>
    %54 = arith.addf %51, %53 : vector<64x4xf32>
    %55 = vector.shape_cast %54 : vector<64x4xf32> to vector<8x8x4xf32>
    %c0_70 = arith.constant 0 : index
    %c1_71 = arith.constant 1 : index
    %c1_72 = arith.constant 1 : index
    %c0_73 = arith.constant 0 : index
    %56 = vector.load %arg1[%c0_70, %c1_71, %c1_72, %c0_73] : memref<1x10x10x8xbf16, #tpu.memory_space<vmem>>, vector<1x8x8x8xbf16>
    %57 = vector.shape_cast %56 : vector<1x8x8x8xbf16> to vector<8x8x8xbf16>
    %c0_74 = arith.constant 0 : index
    %c1_75 = arith.constant 1 : index
    %c2_76 = arith.constant 2 : index
    %c0_77 = arith.constant 0 : index
    %58 = vector.load %arg1[%c0_74, %c1_75, %c2_76, %c0_77] : memref<1x10x10x8xbf16, #tpu.memory_space<vmem>>, vector<1x8x8x8xbf16>
    %59 = vector.shape_cast %58 : vector<1x8x8x8xbf16> to vector<8x8x8xbf16>
    %c0_78 = arith.constant 0 : index
    %c2_79 = arith.constant 2 : index
    %c1_80 = arith.constant 1 : index
    %c0_81 = arith.constant 0 : index
    %60 = vector.load %arg1[%c0_78, %c2_79, %c1_80, %c0_81] : memref<1x10x10x8xbf16, #tpu.memory_space<vmem>>, vector<1x8x8x8xbf16>
    %61 = vector.shape_cast %60 : vector<1x8x8x8xbf16> to vector<8x8x8xbf16>
    %c0_82 = arith.constant 0 : index
    %c2_83 = arith.constant 2 : index
    %c2_84 = arith.constant 2 : index
    %c0_85 = arith.constant 0 : index
    %62 = vector.load %arg1[%c0_82, %c2_83, %c2_84, %c0_85] : memref<1x10x10x8xbf16, #tpu.memory_space<vmem>>, vector<1x8x8x8xbf16>
    %63 = vector.shape_cast %62 : vector<1x8x8x8xbf16> to vector<8x8x8xbf16>
    %64 = tpu.concatenate %57, %59, %61, %63 in 2 : vector<8x8x8xbf16>, vector<8x8x8xbf16>, vector<8x8x8xbf16>, vector<8x8x8xbf16> -> vector<8x8x32xbf16>
    %65 = vector.shape_cast %64 : vector<8x8x32xbf16> to vector<64x32xbf16>
    %c1_86 = arith.constant 1 : index
    %c1_87 = arith.constant 1 : index
    %c0_88 = arith.constant 0 : index
    %c0_89 = arith.constant 0 : index
    %66 = vector.load %arg2[%c1_86, %c1_87, %c0_88, %c0_89] : memref<2x2x32x4xbf16, #tpu.memory_space<vmem>>, vector<1x1x32x4xbf16>
    %67 = vector.shape_cast %66 : vector<1x1x32x4xbf16> to vector<32x4xbf16>
    %cst_90 = arith.constant dense<0.000000e+00> : vector<64x4xf32>
    %68 = tpu.matmul %65, %67, %cst_90 {dimension_numbers = #tpu.dot_dimension_numbers<[1], [0], [0], [1], [0, 0, 1, 1], [], []>} : vector<64x32xbf16>, vector<32x4xbf16>, vector<64x4xf32> -> vector<64x4xf32>
    %c0_91 = arith.constant 0 : index
    %c0_92 = arith.constant 0 : index
    %69 = vector.load %arg3[%c0_91, %c0_92] : memref<1x4xf32, #tpu.memory_space<vmem>>, vector<1x4xf32>
    %70 = vector.broadcast %69 : vector<1x4xf32> to vector<64x4xf32>
    %71 = arith.addf %68, %70 : vector<64x4xf32>
    %72 = vector.shape_cast %71 : vector<64x4xf32> to vector<8x8x4xf32>
    %73 = tpu.concatenate %55, %72 in 2 : vector<8x8x4xf32>, vector<8x8x4xf32> -> vector<8x8x8xf32>
    %74 = arith.truncf %73 : vector<8x8x8xf32> to vector<8x8x8xbf16>
    %c0_93 = arith.constant 0 : index
    %c0_94 = arith.constant 0 : index
    %c1_95 = arith.constant 1 : index
    %c0_96 = arith.constant 0 : index
    %c0_97 = arith.constant 0 : index
    %75 = vector.load %arg4[%c0_93, %c0_94, %c1_95, %c0_96, %c0_97] : memref<1x8x2x8x8xbf16, #tpu.memory_space<vmem>>, vector<1x8x1x8x8xbf16>
    %76 = vector.shape_cast %75 : vector<1x8x1x8x8xbf16> to vector<8x8x8xbf16>
    %77 = vector.shape_cast %74 : vector<8x8x8xbf16> to vector<1x8x1x8x8xbf16>
    tpu.vector_store %arg4[%c0_93, %c0_94, %c1_95, %c0_96, %c0_97], %77 {strides = array<i32>} : memref<1x8x2x8x8xbf16, #tpu.memory_space<vmem>>, vector<1x8x1x8x8xbf16>,
    return
  }
  func.func @transform_0(%arg0: i32) -> (i32, i32, i32, i32) {
    %c0_i32 = arith.constant 0 : i32
    %c0_i32_0 = arith.constant 0 : i32
    %c0_i32_1 = arith.constant 0 : i32
    %c0_i32_2 = arith.constant 0 : i32
    return %arg0, %c0_i32, %c0_i32_0, %c0_i32_1 : i32, i32, i32, i32
  }
  func.func @transform_1(%arg0: i32) -> (i32, i32, i32, i32) {
    %c0_i32 = arith.constant 0 : i32
    %c0_i32_0 = arith.constant 0 : i32
    %c0_i32_1 = arith.constant 0 : i32
    %c0_i32_2 = arith.constant 0 : i32
    %c0_i32_3 = arith.constant 0 : i32
    return %c0_i32, %c0_i32_0, %c0_i32_1, %c0_i32_2 : i32, i32, i32, i32
  }
  func.func @transform_2(%arg0: i32) -> (i32, i32) {
    %c0_i32 = arith.constant 0 : i32
    %c0_i32_0 = arith.constant 0 : i32
    %c0_i32_1 = arith.constant 0 : i32
    return %c0_i32, %c0_i32_0 : i32, i32
  }
  func.func @transform_3(%arg0: i32) -> (i32, i32, i32, i32, i32) {
    %c0_i32 = arith.constant 0 : i32
    %c0_i32_0 = arith.constant 0 : i32
    %c0_i32_1 = arith.constant 0 : i32
    %c0_i32_2 = arith.constant 0 : i32
    %c0_i32_3 = arith.constant 0 : i32
    return %arg0, %c0_i32, %c0_i32_0, %c0_i32_1, %c0_i32_2 : i32, i32, i32, i32, i32
  }
}

</mosaic_0001>

<llo_original>
// kernel: tpu_custom_call.1
$region0: #{tpu_custom_call.1}
  #allocation0 [shape = 'u32[]', space=smem, size = 0x4, offset = 0x4, fixed_abs, tag = 'smem constant byte address 0x4 - core index']
  #allocation1 [shape = 'u32[144,128]{1,0:T(1,128)}', space=vmem, size = 0x12000, scoped, tag = 'internal scratch']
  %s0 = inlined_call_operand.vmem [shape: bf16[2,10,10,8], index: 0, kind: input, shape index: {}]
  %s1 = inlined_call_operand.vmem [shape: bf16[2,2,32,4], index: 1, kind: input, shape index: {}]
  %s2 = inlined_call_operand.vmem [shape: f32[1,4], index: 2, kind: input, shape index: {}]
  %s3 = inlined_call_operand.hbm [shape: bf16[2,8,2,8,8], index: 3, kind: output, shape index: {}]
  %s4 = sld [smem:[#allocation0]]
  $region45: #{tpu_custom_call.1} parent=0
    _
  %s6 = ssub.s32 1, %s4
  %s7 = scalar_select 0, %s6, %s4
  $region1: #{tpu_custom_call.1} parent=0
    #allocation2 [shape = 'u8[65536]{0}', space=vmem, size = 0x10000, scoped, tag = 'output window, operand 0']
    #allocation3 [shape = 's32[2]{0}', space=sflag, size = 0x8, scoped, tag = 'scoped memory for tpu_custom_call.1']
    %8 = vsyncpa [#allocation3], 0
    %s9 = scalar_lea.sflag [#allocation3], 1
    %10 = vsyncpa %s9, 0
    loop: start=0, step=1, limit=4
    $region2: #{tpu_custom_call.1} parent=1 // loop_pre_header
      _
    $region3: #{tpu_custom_call.1} parent=1 // loop_header
      %s12 = sphi 0, %s16
      %p13 = scmp.ge.s32.totalorder %s12, 4
      %s22 = sphi 0, %s24
      %s25 = sphi 0, %s22
      %s26 = sphi 0, %s25
      %s42 = sphi 0, %s26
      %s46 = sphi 0, %s46
      %s48 = sphi 0, %s46
      %s49 = sphi 0, %s48
      %s63 = sphi 0, %s49
      %s67 = sphi 0, %s67
      %s69 = sphi 0, %s67
      %s70 = sphi 0, %s69
      %s84 = sphi 0, %s70
      %s90 = sphi 0, %s92
      %s93 = sphi 0, %s90
      %s94 = sphi 0, %s93
      %s110 = sphi 0, %s94
    $region4: #{tpu_custom_call.1} parent=1 // loop_header_branch
      %15 = sbr.rel (%p13) target = $region8
    $region5: #{tpu_custom_call.1} parent=1 // loop_body
      %s17 = ssub.s32 %s12, 1
      %s18 = ssub.s32 %s12, 2
      %s19 = sadd.s32 %s12, 1
      %s20 = ssub.s32 %s12, %s19
      %p21 = scmp.eq.s32.totalorder %s20, 0
      %s23 = sadd.s32 %s22, 1
      %s24 = scalar_select %p21, %s22, %s23
      %p27 = pneg %p21
      %p28 = scmp.eq.s32.totalorder %s12, 1
      %p29 = por %p27, %p28
      %p30 = scmp.ne.s32.totalorder %s22, %s25
      %p31 = scmp.eq.s32.totalorder %s12, 0
      %p32 = por %p30, %p31
      %p33 = scmp.ne.s32.totalorder %s22, %s25
      %p34 = scmp.eq.s32.totalorder %s17, 1
      %p35 = por %p33, %p34
      %p36 = scmp.ne.s32.totalorder %s25, %s26
      %p37 = scmp.eq.s32.totalorder %s17, 0
      %p38 = por %p36, %p37
      %p39 = scmp.ne.s32.totalorder %s25, %s26
      %p40 = scmp.eq.s32.totalorder %s18, 1
      %p41 = por %p39, %p40
      %p43 = scmp.ne.s32.totalorder %s26, %s42
      %p44 = scmp.eq.s32.totalorder %s18, 0
      %p45 = por %p43, %p44
      %s47 = sadd.s32 %s46, 1
      %p50 = scmp.eq.s32.totalorder %s12, 1
      %p51 = scmp.ne.s32.totalorder %s46, %s48
      %p52 = scmp.eq.s32.totalorder %s12, 0
      %p53 = por %p51, %p52
      %p54 = scmp.ne.s32.totalorder %s46, %s48
      %p55 = scmp.eq.s32.totalorder %s17, 1
      %p56 = por %p54, %p55
      %p57 = scmp.ne.s32.totalorder %s48, %s49
      %p58 = scmp.eq.s32.totalorder %s17, 0
      %p59 = por %p57, %p58
      %p60 = scmp.ne.s32.totalorder %s48, %s49
      %p61 = scmp.eq.s32.totalorder %s18, 1
      %p62 = por %p60, %p61
      %p64 = scmp.ne.s32.totalorder %s49, %s63
      %p65 = scmp.eq.s32.totalorder %s18, 0
      %p66 = por %p64, %p65
      %s68 = sadd.s32 %s67, 1
      %p71 = scmp.eq.s32.totalorder %s12, 1
      %p72 = scmp.ne.s32.totalorder %s67, %s69
      %p73 = scmp.eq.s32.totalorder %s12, 0
      %p74 = por %p72, %p73
      %p75 = scmp.ne.s32.totalorder %s67, %s69
      %p76 = scmp.eq.s32.totalorder %s17, 1
      %p77 = por %p75, %p76
      %p78 = scmp.ne.s32.totalorder %s69, %s70
      %p79 = scmp.eq.s32.totalorder %s17, 0
      %p80 = por %p78, %p79
      %p81 = scmp.ne.s32.totalorder %s69, %s70
      %p82 = scmp.eq.s32.totalorder %s18, 1
      %p83 = por %p81, %p82
      %p85 = scmp.ne.s32.totalorder %s70, %s84
      %p86 = scmp.eq.s32.totalorder %s18, 0
      %p87 = por %p85, %p86
      %s88 = ssub.s32 %s12, %s19
      %p89 = scmp.eq.s32.totalorder %s88, 0
      %s91 = sadd.s32 %s90, 1
      %s92 = scalar_select %p89, %s90, %s91
      %p95 = pneg %p89
      %p96 = scmp.eq.s32.totalorder %s12, 1
      %p97 = por %p95, %p96
      %p98 = scmp.ne.s32.totalorder %s90, %s93
      %p99 = scmp.eq.s32.totalorder %s12, 0
      %p100 = por %p98, %p99
      %p101 = scmp.ne.s32.totalorder %s90, %s93
      %p102 = scmp.eq.s32.totalorder %s17, 1
      %p103 = por %p101, %p102
      %p104 = scmp.ne.s32.totalorder %s93, %s94
      %p105 = scmp.eq.s32.totalorder %s17, 0
      %p106 = por %p104, %p105
      %p107 = scmp.ne.s32.totalorder %s93, %s94
      %p108 = scmp.eq.s32.totalorder %s18, 1
      %p109 = por %p107, %p108
      %p111 = scmp.ne.s32.totalorder %s94, %s110
      %p112 = scmp.eq.s32.totalorder %s18, 0
      %p113 = por %p111, %p112
      %p114 = scmp.le.s32.totalorder 1, %s12
      %p115 = scmp.lt.s32.totalorder %s12, 3
      %p116 = pnand %p114, %p115
      %p117 = pneg %p116
      // Predicated region
      $region9: #{tpu_custom_call.1} parent=5 // pred_check
        _
      $region10: #{tpu_custom_call.1} parent=5 // pred_check_branch
        %119 = sbr.rel (%p116) target = $region12
      $region11: #{tpu_custom_call.1} parent=5 // pred_region
        %s120 = ssub.s32 %s12, 1
        // Predicated region
        $region13: #{tpu_custom_call.1} parent=11 // pred_check
          %p121 = pneg %p59
        $region14: #{tpu_custom_call.1} parent=11 // pred_check_branch
          %123 = sbr.rel (%p121) target = $region16
        $region15: #{tpu_custom_call.1} parent=11 // pred_region
          _
        $region16: #{tpu_custom_call.1} parent=11 // pred_fallthru
          _
        // Predicated region
        $region17: #{tpu_custom_call.1} parent=11 // pred_check
          %p124 = pneg %p80
        $region18: #{tpu_custom_call.1} parent=11 // pred_check_branch
          %126 = sbr.rel (%p124) target = $region20
        $region19: #{tpu_custom_call.1} parent=11 // pred_region
          _
        $region20: #{tpu_custom_call.1} parent=11 // pred_fallthru
          _
      $region12: #{tpu_custom_call.1} parent=5 // pred_fallthru
        _
      %p127 = scmp.lt.s32.totalorder %s12, 2
      // Predicated region
      $region21: #{tpu_custom_call.1} parent=5 // pred_check
        %p128 = pneg %p127
      $region22: #{tpu_custom_call.1} parent=5 // pred_check_branch
        %130 = sbr.rel (%p128) target = $region24
      $region23: #{tpu_custom_call.1} parent=5 // pred_region
        // Predicated region
        $region25: #{tpu_custom_call.1} parent=23 // pred_check
          %p131 = pneg %p32
        $region26: #{tpu_custom_call.1} parent=23 // pred_check_branch
          %133 = sbr.rel (%p131) target = $region28
        $region27: #{tpu_custom_call.1} parent=23 // pred_region
          %p134 = scmp.lt.s32.totalorder %s12, 1
          %s135 = scalar_select %p134, %s12, 1
          %s136 = smul.addr %s135, 20
          %s137 = smul.addr %s136, 4
          %s138 = scalar_lea.vmem %s0, %s137
        $region28: #{tpu_custom_call.1} parent=23 // pred_fallthru
          _
      $region24: #{tpu_custom_call.1} parent=5 // pred_fallthru
        _
      %p139 = scmp.le.s32.totalorder 1, %s12
      %p140 = scmp.lt.s32.totalorder %s12, 3
      %p141 = pnand %p139, %p140
      %p142 = pneg %p141
      // Predicated region
      $region29: #{tpu_custom_call.1} parent=5 // pred_check
        _
      $region30: #{tpu_custom_call.1} parent=5 // pred_check_branch
        %144 = sbr.rel (%p141) target = $region32
      $region31: #{tpu_custom_call.1} parent=5 // pred_region
        %s145 = ssub.s32 %s12, 1
        %p146 = scmp.lt.s32.totalorder %s17, 1
        %s147 = scalar_select %p146, %s17, 1
        %s148 = smul.addr %s147, 20
        %s149 = smul.addr %s148, 4
        %s150 = scalar_lea.vmem %s0, %s149
        %p151 = pneg %p38
        %p152 = pneg %p35
        %p153 = pneg %p59
        %p154 = pneg %p56
        %p155 = pneg %p80
        %p156 = pneg %p77
        %p157 = pneg %p106
        %p158 = pneg %p103
        %s159 = sand.u32 %s93, 1
        %s160 = scalar_lea.sflag [#allocation3], %s159
        %s161 = sand.u32 %s93, 1
        %s162 = smul.addr %s161, 64
        %s163 = scalar_lea.vmem [#allocation2], %s162
        %p164 = scmp.lt.s32.totalorder %s17, 1
        %s165 = scalar_select %p164, %s17, 1
        %s166 = smul.addr %s165, 20
        %s167 = smul.addr %s166, 4
        %s168 = scalar_lea.vmem %s0, %s167
        %v170 = vld [vmem:[%s168] sm:$0xf]
        %v171 = vld [vmem:[%s168 + $0x8] sm:$0xf]
        %v172 = vld [vmem:[%s168 + $0x10] sm:$0xf]
        %v173 = vld [vmem:[%s168 + $0x18] sm:$0xf]
        %v174 = vld [vmem:[%s168 + $0x20] sm:$0xf]
        %v175 = vld [vmem:[%s168 + $0x28] sm:$0xf]
        %v176 = vld [vmem:[%s168 + $0x30] sm:$0xf]
        %v177 = vld [vmem:[%s168 + $0x38] sm:$0xf]
        %v178 = vld [vmem:[%s168 + $0x4] sm:$0x1]
        %v179 = vld [vmem:[%s168 + $0xc] sm:$0x1]
        %v180 = vld [vmem:[%s168 + $0x14] sm:$0x1]
        %v181 = vld [vmem:[%s168 + $0x1c] sm:$0x1]
        %v182 = vld [vmem:[%s168 + $0x24] sm:$0x1]
        %v183 = vld [vmem:[%s168 + $0x2c] sm:$0x1]
        %v184 = vld [vmem:[%s168 + $0x34] sm:$0x1]
        %v185 = vld [vmem:[%s168 + $0x3c] sm:$0x1]
        %s186 = scalar_lea.vmem %s168, 8
        %v187 = vld [vmem:[%s186] sm:$0xf]
        %v188 = vld [vmem:[%s186 + $0x8] sm:$0xf]
        %v189 = vld [vmem:[%s186 + $0x10] sm:$0xf]
        %v190 = vld [vmem:[%s186 + $0x18] sm:$0xf]
        %v191 = vld [vmem:[%s186 + $0x20] sm:$0xf]
        %v192 = vld [vmem:[%s186 + $0x28] sm:$0xf]
        %v193 = vld [vmem:[%s186 + $0x30] sm:$0xf]
        %v194 = vld [vmem:[%s186 + $0x38] sm:$0xf]
        %v195 = vld [vmem:[%s186 + $0x4] sm:$0x1]
        %v196 = vld [vmem:[%s186 + $0xc] sm:$0x1]
        %v197 = vld [vmem:[%s186 + $0x14] sm:$0x1]
        %v198 = vld [vmem:[%s186 + $0x1c] sm:$0x1]
        %v199 = vld [vmem:[%s186 + $0x24] sm:$0x1]
        %v200 = vld [vmem:[%s186 + $0x2c] sm:$0x1]
        %v201 = vld [vmem:[%s186 + $0x34] sm:$0x1]
        %v202 = vld [vmem:[%s186 + $0x3c] sm:$0x1]
        %v219 = vunpack.c.l.b16 %v170
        %v220 = vunpack.c.l.b16 %v178
        %v221 = vunpack.c.l.b16 %v171
        %v222 = vunpack.c.l.b16 %v179
        %v223 = vunpack.c.l.b16 %v172
        %v224 = vunpack.c.l.b16 %v180
        %v225 = vunpack.c.l.b16 %v173
        %v226 = vunpack.c.l.b16 %v181
        %v227 = vunpack.c.l.b16 %v174
        %v228 = vunpack.c.l.b16 %v182
        %v229 = vunpack.c.l.b16 %v175
        %v230 = vunpack.c.l.b16 %v183
        %v231 = vunpack.c.l.b16 %v176
        %v232 = vunpack.c.l.b16 %v184
        %v233 = vunpack.c.l.b16 %v177
        %v234 = vunpack.c.l.b16 %v185
        %v235 = vpack.c.b16 %v220, %v219
        %v236 = vpack.c.b16 %v222, %v221
        %v237 = vpack.c.b16 %v224, %v223
        %v238 = vpack.c.b16 %v226, %v225
        %v239 = vpack.c.b16 %v228, %v227
        %v240 = vpack.c.b16 %v230, %v229
        %v241 = vpack.c.b16 %v232, %v231
        %v242 = vpack.c.b16 %v234, %v233
        %v244 = vshrl.u32 %v235, 16
        %v246 = vshll.u32 %v235, 16
        %v248 = vrot.slane %v246, 1
        %v249 = vor.u32 %v244, %v248
        %v251 = vshrl.u32 %v236, 16
        %v253 = vshll.u32 %v236, 16
        %v255 = vrot.slane %v253, 1
        %v256 = vor.u32 %v251, %v255
        %v258 = vshrl.u32 %v237, 16
        %v260 = vshll.u32 %v237, 16
        %v262 = vrot.slane %v260, 1
        %v263 = vor.u32 %v258, %v262
        %v265 = vshrl.u32 %v238, 16
        %v267 = vshll.u32 %v238, 16
        %v269 = vrot.slane %v267, 1
        %v270 = vor.u32 %v265, %v269
        %v272 = vshrl.u32 %v239, 16
        %v274 = vshll.u32 %v239, 16
        %v276 = vrot.slane %v274, 1
        %v277 = vor.u32 %v272, %v276
        %v279 = vshrl.u32 %v240, 16
        %v281 = vshll.u32 %v240, 16
        %v283 = vrot.slane %v281, 1
        %v284 = vor.u32 %v279, %v283
        %v286 = vshrl.u32 %v241, 16
        %v288 = vshll.u32 %v241, 16
        %v290 = vrot.slane %v288, 1
        %v291 = vor.u32 %v286, %v290
        %v293 = vshrl.u32 %v242, 16
        %v295 = vshll.u32 %v242, 16
        %v297 = vrot.slane %v295, 1
        %v298 = vor.u32 %v293, %v297
        %299 = vrot.lane.b32.xlu0 %v249, 8
        %v300 = vpop.permute.xlu0 %299
        %301 = vrot.lane.b32.xlu0 %v256, 8
        %v302 = vpop.permute.xlu0 %301
        %303 = vrot.lane.b32.xlu0 %v263, 8
        %v304 = vpop.permute.xlu0 %303
        %305 = vrot.lane.b32.xlu0 %v270, 8
        %v306 = vpop.permute.xlu0 %305
        %307 = vrot.lane.b32.xlu0 %v277, 8
        %v308 = vpop.permute.xlu0 %307
        %309 = vrot.lane.b32.xlu0 %v284, 8
        %v310 = vpop.permute.xlu0 %309
        %311 = vrot.lane.b32.xlu0 %v291, 8
        %v312 = vpop.permute.xlu0 %311
        %313 = vrot.lane.b32.xlu0 %v298, 8
        %v314 = vpop.permute.xlu0 %313
        %v323 = vunpack.c.l.b16 %v187
        %v324 = vunpack.c.l.b16 %v188
        %v325 = vunpack.c.l.b16 %v189
        %v326 = vunpack.c.l.b16 %v190
        %v327 = vunpack.c.l.b16 %v191
        %v328 = vunpack.c.l.b16 %v192
        %v329 = vunpack.c.l.b16 %v193
        %v330 = vunpack.c.l.b16 %v194
        %v331 = vpack.c.b16 %v323, %v323
        %v332 = vpack.c.b16 %v324, %v324
        %v333 = vpack.c.b16 %v325, %v325
        %v334 = vpack.c.b16 %v326, %v326
        %v335 = vpack.c.b16 %v327, %v327
        %v336 = vpack.c.b16 %v328, %v328
        %v337 = vpack.c.b16 %v329, %v329
        %v338 = vpack.c.b16 %v330, %v330
        %339 = vrot.lane.b32.xlu0 %v331, 16
        %v340 = vpop.permute.xlu0 %339
        %341 = vrot.lane.b32.xlu0 %v332, 16
        %v342 = vpop.permute.xlu0 %341
        %343 = vrot.lane.b32.xlu0 %v333, 16
        %v344 = vpop.permute.xlu0 %343
        %345 = vrot.lane.b32.xlu0 %v334, 16
        %v346 = vpop.permute.xlu0 %345
        %347 = vrot.lane.b32.xlu0 %v335, 16
        %v348 = vpop.permute.xlu0 %347
        %349 = vrot.lane.b32.xlu0 %v336, 16
        %v350 = vpop.permute.xlu0 %349
        %351 = vrot.lane.b32.xlu0 %v337, 16
        %v352 = vpop.permute.xlu0 %351
        %353 = vrot.lane.b32.xlu0 %v338, 16
        %v354 = vpop.permute.xlu0 %353
        %v363 = vunpack.c.l.b16 %v195
        %v364 = vunpack.c.l.b16 %v196
        %v365 = vunpack.c.l.b16 %v197
        %v366 = vunpack.c.l.b16 %v198
        %v367 = vunpack.c.l.b16 %v199
        %v368 = vunpack.c.l.b16 %v200
        %v369 = vunpack.c.l.b16 %v201
        %v370 = vunpack.c.l.b16 %v202
        %v371 = vpack.c.b16 %v363, %v323
        %v372 = vpack.c.b16 %v364, %v324
        %v373 = vpack.c.b16 %v365, %v325
        %v374 = vpack.c.b16 %v366, %v326
        %v375 = vpack.c.b16 %v367, %v327
        %v376 = vpack.c.b16 %v368, %v328
        %v377 = vpack.c.b16 %v369, %v329
        %v378 = vpack.c.b16 %v370, %v330
        %v380 = vshrl.u32 %v371, 16
        %v382 = vshll.u32 %v371, 16
        %v384 = vrot.slane %v382, 1
        %v385 = vor.u32 %v380, %v384
        %v387 = vshrl.u32 %v372, 16
        %v389 = vshll.u32 %v372, 16
        %v391 = vrot.slane %v389, 1
        %v392 = vor.u32 %v387, %v391
        %v394 = vshrl.u32 %v373, 16
        %v396 = vshll.u32 %v373, 16
        %v398 = vrot.slane %v396, 1
        %v399 = vor.u32 %v394, %v398
        %v401 = vshrl.u32 %v374, 16
        %v403 = vshll.u32 %v374, 16
        %v405 = vrot.slane %v403, 1
        %v406 = vor.u32 %v401, %v405
        %v408 = vshrl.u32 %v375, 16
        %v410 = vshll.u32 %v375, 16
        %v412 = vrot.slane %v410, 1
        %v413 = vor.u32 %v408, %v412
        %v415 = vshrl.u32 %v376, 16
        %v417 = vshll.u32 %v376, 16
        %v419 = vrot.slane %v417, 1
        %v420 = vor.u32 %v415, %v419
        %v422 = vshrl.u32 %v377, 16
        %v424 = vshll.u32 %v377, 16
        %v426 = vrot.slane %v424, 1
        %v427 = vor.u32 %v422, %v426
        %v429 = vshrl.u32 %v378, 16
        %v431 = vshll.u32 %v378, 16
        %v433 = vrot.slane %v431, 1
        %v434 = vor.u32 %v429, %v433
        %435 = vrot.lane.b32.xlu0 %v385, 24
        %v436 = vpop.permute.xlu0 %435
        %437 = vrot.lane.b32.xlu0 %v392, 24
        %v438 = vpop.permute.xlu0 %437
        %439 = vrot.lane.b32.xlu0 %v399, 24
        %v440 = vpop.permute.xlu0 %439
        %441 = vrot.lane.b32.xlu0 %v406, 24
        %v442 = vpop.permute.xlu0 %441
        %443 = vrot.lane.b32.xlu0 %v413, 24
        %v444 = vpop.permute.xlu0 %443
        %445 = vrot.lane.b32.xlu0 %v420, 24
        %v446 = vpop.permute.xlu0 %445
        %447 = vrot.lane.b32.xlu0 %v427, 24
        %v448 = vpop.permute.xlu0 %447
        %449 = vrot.lane.b32.xlu0 %v434, 24
        %v450 = vpop.permute.xlu0 %449
        %vm451 = vcmask 64512
        %v454 = vsel %vm451, %v170, %v300
        %v457 = vsel %vm451, %v171, %v302
        %v460 = vsel %vm451, %v172, %v304
        %v463 = vsel %vm451, %v173, %v306
        %v466 = vsel %vm451, %v174, %v308
        %v469 = vsel %vm451, %v175, %v310
        %v472 = vsel %vm451, %v176, %v312
        %v475 = vsel %vm451, %v177, %v314
        %vm476 = vcmask 130048
        %v478 = vsel %vm476, %v454, %v340
        %v480 = vsel %vm476, %v457, %v342
        %v482 = vsel %vm476, %v460, %v344
        %v484 = vsel %vm476, %v463, %v346
        %v486 = vsel %vm476, %v466, %v348
        %v488 = vsel %vm476, %v469, %v350
        %v490 = vsel %vm476, %v472, %v352
        %v492 = vsel %vm476, %v475, %v354
        %vm493 = vcmask 195584
        %v495 = vsel %vm493, %v478, %v436
        %v497 = vsel %vm493, %v480, %v438
        %v499 = vsel %vm493, %v482, %v440
        %v501 = vsel %vm493, %v484, %v442
        %v503 = vsel %vm493, %v486, %v444
        %v505 = vsel %vm493, %v488, %v446
        %v507 = vsel %vm493, %v490, %v448
        %v509 = vsel %vm493, %v492, %v450
        %v510 = vld [vmem:[%s1] sm:$0xf]
        %v511 = vld [vmem:[%s1 + $0x4] sm:$0xf]
        %v512 = vld [vmem:[%s1 + $0x8] sm:$0xf]
        %v513 = vld [vmem:[%s1 + $0xc] sm:$0xf]
        %v514 = vld [vmem:[%s2] sm:$0x1]
        %v516 = vlaneseq
        %v517 = vshrl.u32 %v516, 7
        %v518 = vsub.s32 0, %v517
        %v519 = vrot.slane %v514, %v518
        %v529 = vunpack.c.l.b16 %v495
        %v530 = vunpack.c.l.b16 %v497
        %v531 = vunpack.c.l.b16 %v499
        %v532 = vunpack.c.l.b16 %v501
        %v533 = vunpack.c.l.b16 %v503
        %v534 = vunpack.c.l.b16 %v505
        %v535 = vunpack.c.l.b16 %v507
        %v536 = vunpack.c.l.b16 %v509
        %v537 = vpack.c.b16 %v530, %v529
        %v538 = vpack.c.b16 %v532, %v531
        %v539 = vpack.c.b16 %v534, %v533
        %v540 = vpack.c.b16 %v536, %v535
        %v545 = vunpack.c.l.b16 %v510
        %v546 = vunpack.c.l.b16 %v511
        %v547 = vunpack.c.l.b16 %v512
        %v548 = vunpack.c.l.b16 %v513
        %v549 = vpack.c.b16 %v546, %v545
        %v550 = vpack.c.b16 %v548, %v547
        %vm553 = vcmask 261120
        %v555 = vsel %vm553, %v537, 0
        %v558 = vsel %vm553, %v538, 0
        %v561 = vsel %vm553, %v539, 0
        %v564 = vsel %vm553, %v540, 0
        %566 = vmatprep.subr.bf16.mxu0 0
        %567 = vmatpush1.bf16.msra.mxu0 0
        %568 = vmatprep.subr.bf16.mxu0 0
        %569 = vmatpush1.bf16.msra.mxu0 0
        %570 = vmatprep.subr.bf16.mxu0 0
        %571 = vmatpush1.bf16.msra.mxu0 0
        %572 = vmatprep.subr.bf16.mxu0 0
        %573 = vmatpush1.bf16.msra.mxu0 0
        %574 = vmatprep.subr.bf16.mxu0 0
        %575 = vmatpush1.bf16.msra.mxu0 0
        %576 = vmatprep.subr.bf16.mxu0 0
        %577 = vmatpush1.bf16.msra.mxu0 0
        %578 = vmatprep.subr.bf16.mxu0 0
        %579 = vmatpush1.bf16.msra.mxu0 %v550
        %580 = vmatprep.subr.bf16.mxu0 0
        %581 = vmatpush1.bf16.msra.mxu0 %v549
        %582 = vmatprep.subr.bf16.mxu0 0
        %583 = vmatpush2.bf16.msra.mxu0 0
        %584 = vmatprep.subr.bf16.mxu0 0
        %585 = vmatpush2.bf16.msra.mxu0 0
        %586 = vmatprep.subr.bf16.mxu0 0
        %587 = vmatpush2.bf16.msra.mxu0 0
        %588 = vmatprep.subr.bf16.mxu0 0
        %589 = vmatpush2.bf16.msra.mxu0 0
        %590 = vmatprep.subr.bf16.mxu0 0
        %591 = vmatpush2.bf16.msra.mxu0 0
        %592 = vmatprep.subr.bf16.mxu0 0
        %593 = vmatpush2.bf16.msra.mxu0 0
        %594 = vmatprep.subr.bf16.mxu0 0
        %595 = vmatpush2.bf16.msra.mxu0 0
        %596 = vmatprep.subr.bf16.mxu0 0
        %597 = vmatpush2.bf16.msra.mxu0 0
        %598 = vmatprep.mubr.bf16.mxu0 0
        %599 = vmatmul.mubr.bf16.gmra.mxu0 %v555
        %v600 = vpop.f32.mrf.mxu0
        %v601 = vadd.f32 %v519, %v600
        %v602 = vpop.f32.mrf.mxu0
        %v603 = vpop.f32.mrf.mxu0
        %v604 = vadd.f32 %v519, %v603
        %v605 = vpop.f32.mrf.mxu0
        %606 = vmatprep.mubr.bf16.mxu0 0
        %607 = vmatmul.mubr.bf16.gmra.mxu0 %v558
        %v608 = vpop.f32.mrf.mxu0
        %v609 = vadd.f32 %v519, %v608
        %v610 = vpop.f32.mrf.mxu0
        %v611 = vpop.f32.mrf.mxu0
        %v612 = vadd.f32 %v519, %v611
        %v613 = vpop.f32.mrf.mxu0
        %614 = vmatprep.mubr.bf16.mxu0 0
        %615 = vmatmul.mubr.bf16.gmra.mxu0 %v561
        %v616 = vpop.f32.mrf.mxu0
        %v617 = vadd.f32 %v519, %v616
        %v618 = vpop.f32.mrf.mxu0
        %v619 = vpop.f32.mrf.mxu0
        %v620 = vadd.f32 %v519, %v619
        %v621 = vpop.f32.mrf.mxu0
        %622 = vmatprep.mubr.bf16.mxu0 0
        %623 = vmatmul.mubr.bf16.gmra.mxu0 %v564
        %v624 = vpop.f32.mrf.mxu0
        %v625 = vadd.f32 %v519, %v624
        %v626 = vpop.f32.mrf.mxu0
        %v627 = vpop.f32.mrf.mxu0
        %v628 = vadd.f32 %v519, %v627
        %v629 = vpop.f32.mrf.mxu0
        %630 = vdwg.mxu0
        %v631 = vld [vmem:[%s168] sm:$0xe]
        %v632 = vld [vmem:[%s168 + $0x8] sm:$0xe]
        %v633 = vld [vmem:[%s168 + $0x10] sm:$0xe]
        %v634 = vld [vmem:[%s168 + $0x18] sm:$0xe]
        %v635 = vld [vmem:[%s168 + $0x20] sm:$0xe]
        %v636 = vld [vmem:[%s168 + $0x28] sm:$0xe]
        %v637 = vld [vmem:[%s168 + $0x30] sm:$0xe]
        %v638 = vld [vmem:[%s168 + $0x38] sm:$0xe]
        %v639 = vld [vmem:[%s186] sm:$0xe]
        %v640 = vld [vmem:[%s186 + $0x8] sm:$0xe]
        %v641 = vld [vmem:[%s186 + $0x10] sm:$0xe]
        %v642 = vld [vmem:[%s186 + $0x18] sm:$0xe]
        %v643 = vld [vmem:[%s186 + $0x20] sm:$0xe]
        %v644 = vld [vmem:[%s186 + $0x28] sm:$0xe]
        %v645 = vld [vmem:[%s186 + $0x30] sm:$0xe]
        %v646 = vld [vmem:[%s186 + $0x38] sm:$0xe]
        %v655 = vunpack.c.l.b16 %v631
        %v656 = vunpack.c.l.b16 %v632
        %v657 = vunpack.c.l.b16 %v633
        %v658 = vunpack.c.l.b16 %v634
        %v659 = vunpack.c.l.b16 %v635
        %v660 = vunpack.c.l.b16 %v636
        %v661 = vunpack.c.l.b16 %v637
        %v662 = vunpack.c.l.b16 %v638
        %v663 = vpack.c.b16 %v220, %v655
        %v664 = vpack.c.b16 %v222, %v656
        %v665 = vpack.c.b16 %v224, %v657
        %v666 = vpack.c.b16 %v226, %v658
        %v667 = vpack.c.b16 %v228, %v659
        %v668 = vpack.c.b16 %v230, %v660
        %v669 = vpack.c.b16 %v232, %v661
        %v670 = vpack.c.b16 %v234, %v662
        %v672 = vshrl.u32 %v663, 16
        %v674 = vshll.u32 %v663, 16
        %v676 = vrot.slane %v674, 1
        %v677 = vor.u32 %v672, %v676
        %v679 = vshrl.u32 %v664, 16
        %v681 = vshll.u32 %v664, 16
        %v683 = vrot.slane %v681, 1
        %v684 = vor.u32 %v679, %v683
        %v686 = vshrl.u32 %v665, 16
        %v688 = vshll.u32 %v665, 16
        %v690 = vrot.slane %v688, 1
        %v691 = vor.u32 %v686, %v690
        %v693 = vshrl.u32 %v666, 16
        %v695 = vshll.u32 %v666, 16
        %v697 = vrot.slane %v695, 1
        %v698 = vor.u32 %v693, %v697
        %v700 = vshrl.u32 %v667, 16
        %v702 = vshll.u32 %v667, 16
        %v704 = vrot.slane %v702, 1
        %v705 = vor.u32 %v700, %v704
        %v707 = vshrl.u32 %v668, 16
        %v709 = vshll.u32 %v668, 16
        %v711 = vrot.slane %v709, 1
        %v712 = vor.u32 %v707, %v711
        %v714 = vshrl.u32 %v669, 16
        %v716 = vshll.u32 %v669, 16
        %v718 = vrot.slane %v716, 1
        %v719 = vor.u32 %v714, %v718
        %v721 = vshrl.u32 %v670, 16
        %v723 = vshll.u32 %v670, 16
        %v725 = vrot.slane %v723, 1
        %v726 = vor.u32 %v721, %v725
        %727 = vrot.lane.b32.xlu0 %v677, 8
        %v728 = vpop.permute.xlu0 %727
        %729 = vrot.lane.b32.xlu0 %v684, 8
        %v730 = vpop.permute.xlu0 %729
        %731 = vrot.lane.b32.xlu0 %v691, 8
        %v732 = vpop.permute.xlu0 %731
        %733 = vrot.lane.b32.xlu0 %v698, 8
        %v734 = vpop.permute.xlu0 %733
        %735 = vrot.lane.b32.xlu0 %v705, 8
        %v736 = vpop.permute.xlu0 %735
        %737 = vrot.lane.b32.xlu0 %v712, 8
        %v738 = vpop.permute.xlu0 %737
        %739 = vrot.lane.b32.xlu0 %v719, 8
        %v740 = vpop.permute.xlu0 %739
        %741 = vrot.lane.b32.xlu0 %v726, 8
        %v742 = vpop.permute.xlu0 %741
        %743 = vrot.lane.b32.xlu0 %v371, 16
        %v744 = vpop.permute.xlu0 %743
        %745 = vrot.lane.b32.xlu0 %v372, 16
        %v746 = vpop.permute.xlu0 %745
        %747 = vrot.lane.b32.xlu0 %v373, 16
        %v748 = vpop.permute.xlu0 %747
        %749 = vrot.lane.b32.xlu0 %v374, 16
        %v750 = vpop.permute.xlu0 %749
        %751 = vrot.lane.b32.xlu0 %v375, 16
        %v752 = vpop.permute.xlu0 %751
        %753 = vrot.lane.b32.xlu0 %v376, 16
        %v754 = vpop.permute.xlu0 %753
        %755 = vrot.lane.b32.xlu0 %v377, 16
        %v756 = vpop.permute.xlu0 %755
        %757 = vrot.lane.b32.xlu0 %v378, 16
        %v758 = vpop.permute.xlu0 %757
        %v767 = vunpack.c.l.b16 %v639
        %v768 = vunpack.c.l.b16 %v640
        %v769 = vunpack.c.l.b16 %v641
        %v770 = vunpack.c.l.b16 %v642
        %v771 = vunpack.c.l.b16 %v643
        %v772 = vunpack.c.l.b16 %v644
        %v773 = vunpack.c.l.b16 %v645
        %v774 = vunpack.c.l.b16 %v646
        %v775 = vpack.c.b16 %v363, %v767
        %v776 = vpack.c.b16 %v364, %v768
        %v777 = vpack.c.b16 %v365, %v769
        %v778 = vpack.c.b16 %v366, %v770
        %v779 = vpack.c.b16 %v367, %v771
        %v780 = vpack.c.b16 %v368, %v772
        %v781 = vpack.c.b16 %v369, %v773
        %v782 = vpack.c.b16 %v370, %v774
        %v784 = vshrl.u32 %v775, 16
        %v786 = vshll.u32 %v775, 16
        %v788 = vrot.slane %v786, 1
        %v789 = vor.u32 %v784, %v788
        %v791 = vshrl.u32 %v776, 16
        %v793 = vshll.u32 %v776, 16
        %v795 = vrot.slane %v793, 1
        %v796 = vor.u32 %v791, %v795
        %v798 = vshrl.u32 %v777, 16
        %v800 = vshll.u32 %v777, 16
        %v802 = vrot.slane %v800, 1
        %v803 = vor.u32 %v798, %v802
        %v805 = vshrl.u32 %v778, 16
        %v807 = vshll.u32 %v778, 16
        %v809 = vrot.slane %v807, 1
        %v810 = vor.u32 %v805, %v809
        %v812 = vshrl.u32 %v779, 16
        %v814 = vshll.u32 %v779, 16
        %v816 = vrot.slane %v814, 1
        %v817 = vor.u32 %v812, %v816
        %v819 = vshrl.u32 %v780, 16
        %v821 = vshll.u32 %v780, 16
        %v823 = vrot.slane %v821, 1
        %v824 = vor.u32 %v819, %v823
        %v826 = vshrl.u32 %v781, 16
        %v828 = vshll.u32 %v781, 16
        %v830 = vrot.slane %v828, 1
        %v831 = vor.u32 %v826, %v830
        %v833 = vshrl.u32 %v782, 16
        %v835 = vshll.u32 %v782, 16
        %v837 = vrot.slane %v835, 1
        %v838 = vor.u32 %v833, %v837
        %839 = vrot.lane.b32.xlu0 %v789, 24
        %v840 = vpop.permute.xlu0 %839
        %841 = vrot.lane.b32.xlu0 %v796, 24
        %v842 = vpop.permute.xlu0 %841
        %843 = vrot.lane.b32.xlu0 %v803, 24
        %v844 = vpop.permute.xlu0 %843
        %845 = vrot.lane.b32.xlu0 %v810, 24
        %v846 = vpop.permute.xlu0 %845
        %847 = vrot.lane.b32.xlu0 %v817, 24
        %v848 = vpop.permute.xlu0 %847
        %849 = vrot.lane.b32.xlu0 %v824, 24
        %v850 = vpop.permute.xlu0 %849
        %851 = vrot.lane.b32.xlu0 %v831, 24
        %v852 = vpop.permute.xlu0 %851
        %853 = vrot.lane.b32.xlu0 %v838, 24
        %v854 = vpop.permute.xlu0 %853
        %v856 = vsel %vm451, %v235, %v728
        %v858 = vsel %vm451, %v236, %v730
        %v860 = vsel %vm451, %v237, %v732
        %v862 = vsel %vm451, %v238, %v734
        %v864 = vsel %vm451, %v239, %v736
        %v866 = vsel %vm451, %v240, %v738
        %v868 = vsel %vm451, %v241, %v740
        %v870 = vsel %vm451, %v242, %v742
        %v872 = vsel %vm476, %v856, %v744
        %v874 = vsel %vm476, %v858, %v746
        %v876 = vsel %vm476, %v860, %v748
        %v878 = vsel %vm476, %v862, %v750
        %v880 = vsel %vm476, %v864, %v752
        %v882 = vsel %vm476, %v866, %v754
        %v884 = vsel %vm476, %v868, %v756
        %v886 = vsel %vm476, %v870, %v758
        %v888 = vsel %vm493, %v872, %v840
        %v890 = vsel %vm493, %v874, %v842
        %v892 = vsel %vm493, %v876, %v844
        %v894 = vsel %vm493, %v878, %v846
        %v896 = vsel %vm493, %v880, %v848
        %v898 = vsel %vm493, %v882, %v850
        %v900 = vsel %vm493, %v884, %v852
        %v902 = vsel %vm493, %v886, %v854
        %v911 = vunpack.c.l.b16 %v888
        %v912 = vunpack.c.h.b16 %v888
        %v913 = vunpack.c.l.b16 %v890
        %v914 = vunpack.c.h.b16 %v890
        %v915 = vunpack.c.l.b16 %v892
        %v916 = vunpack.c.h.b16 %v892
        %v917 = vunpack.c.l.b16 %v894
        %v918 = vunpack.c.h.b16 %v894
        %v919 = vunpack.c.l.b16 %v896
        %v920 = vunpack.c.h.b16 %v896
        %v921 = vunpack.c.l.b16 %v898
        %v922 = vunpack.c.h.b16 %v898
        %v923 = vunpack.c.l.b16 %v900
        %v924 = vunpack.c.h.b16 %v900
        %v925 = vunpack.c.l.b16 %v902
        %v926 = vunpack.c.h.b16 %v902
        %v927 = vpack.c.b16 %v911, %v911
        %v928 = vpack.c.b16 %v912, %v912
        %v929 = vpack.c.b16 %v913, %v913
        %v930 = vpack.c.b16 %v914, %v914
        %v931 = vpack.c.b16 %v915, %v915
        %v932 = vpack.c.b16 %v916, %v916
        %v933 = vpack.c.b16 %v917, %v917
        %v934 = vpack.c.b16 %v918, %v918
        %v935 = vpack.c.b16 %v919, %v919
        %v936 = vpack.c.b16 %v920, %v920
        %v937 = vpack.c.b16 %v921, %v921
        %v938 = vpack.c.b16 %v922, %v922
        %v939 = vpack.c.b16 %v923, %v923
        %v940 = vpack.c.b16 %v924, %v924
        %v941 = vpack.c.b16 %v925, %v925
        %v942 = vpack.c.b16 %v926, %v926
        %vm943 = vsmask.f32 3328
        %vm944 = vsmask.f32 7440
        %vm945 = vmor %vm943, %vm944
        %v947 = vshrl.u32 %v927, 16
        %v949 = vrot.slane %v947, 4
        %v950 = vshll.u32 %v927, 16
        %v952 = vrot.slane %v950, 5
        %v953 = vor.u32 %v949, %v952
        %v954 = vrot.slane %v953, 4
        %v956 = vshll.u32 %v928, 16
        %v958 = vrot.slane %v956, 5
        %v959 = vsel %vm945, %v954, %v958
        %v961 = vshrl.u32 %v929, 16
        %v963 = vrot.slane %v961, 4
        %v964 = vshll.u32 %v929, 16
        %v966 = vrot.slane %v964, 5
        %v967 = vor.u32 %v963, %v966
        %v968 = vrot.slane %v967, 4
        %v970 = vshll.u32 %v930, 16
        %v972 = vrot.slane %v970, 5
        %v973 = vsel %vm945, %v968, %v972
        %v975 = vshrl.u32 %v931, 16
        %v977 = vrot.slane %v975, 4
        %v978 = vshll.u32 %v931, 16
        %v980 = vrot.slane %v978, 5
        %v981 = vor.u32 %v977, %v980
        %v982 = vrot.slane %v981, 4
        %v984 = vshll.u32 %v932, 16
        %v986 = vrot.slane %v984, 5
        %v987 = vsel %vm945, %v982, %v986
        %v989 = vshrl.u32 %v933, 16
        %v991 = vrot.slane %v989, 4
        %v992 = vshll.u32 %v933, 16
        %v994 = vrot.slane %v992, 5
        %v995 = vor.u32 %v991, %v994
        %v996 = vrot.slane %v995, 4
        %v998 = vshll.u32 %v934, 16
        %v1000 = vrot.slane %v998, 5
        %v1001 = vsel %vm945, %v996, %v1000
        %v1003 = vshrl.u32 %v935, 16
        %v1005 = vrot.slane %v1003, 4
        %v1006 = vshll.u32 %v935, 16
        %v1008 = vrot.slane %v1006, 5
        %v1009 = vor.u32 %v1005, %v1008
        %v1010 = vrot.slane %v1009, 4
        %v1012 = vshll.u32 %v936, 16
        %v1014 = vrot.slane %v1012, 5
        %v1015 = vsel %vm945, %v1010, %v1014
        %v1017 = vshrl.u32 %v937, 16
        %v1019 = vrot.slane %v1017, 4
        %v1020 = vshll.u32 %v937, 16
        %v1022 = vrot.slane %v1020, 5
        %v1023 = vor.u32 %v1019, %v1022
        %v1024 = vrot.slane %v1023, 4
        %v1026 = vshll.u32 %v938, 16
        %v1028 = vrot.slane %v1026, 5
        %v1029 = vsel %vm945, %v1024, %v1028
        %v1031 = vshrl.u32 %v939, 16
        %v1033 = vrot.slane %v1031, 4
        %v1034 = vshll.u32 %v939, 16
        %v1036 = vrot.slane %v1034, 5
        %v1037 = vor.u32 %v1033, %v1036
        %v1038 = vrot.slane %v1037, 4
        %v1040 = vshll.u32 %v940, 16
        %v1042 = vrot.slane %v1040, 5
        %v1043 = vsel %vm945, %v1038, %v1042
        %v1045 = vshrl.u32 %v941, 16
        %v1047 = vrot.slane %v1045, 4
        %v1048 = vshll.u32 %v941, 16
        %v1050 = vrot.slane %v1048, 5
        %v1051 = vor.u32 %v1047, %v1050
        %v1052 = vrot.slane %v1051, 4
        %v1054 = vshll.u32 %v942, 16
        %v1056 = vrot.slane %v1054, 5
        %v1057 = vsel %vm945, %v1052, %v1056
        %s1058 = scalar_lea.vmem %s1, 16
        %v1059 = vld [vmem:[%s1058] sm:$0xf]
        %v1060 = vld [vmem:[%s1058 + $0x4] sm:$0xf]
        %v1061 = vld [vmem:[%s1058 + $0x8] sm:$0xf]
        %v1062 = vld [vmem:[%s1058 + $0xc] sm:$0xf]
        %v1063 = vunpack.c.l.b16 %v959
        %v1064 = vunpack.c.l.b16 %v973
        %v1065 = vunpack.c.l.b16 %v987
        %v1066 = vunpack.c.l.b16 %v1001
        %v1067 = vunpack.c.l.b16 %v1015
        %v1068 = vunpack.c.l.b16 %v1029
        %v1069 = vunpack.c.l.b16 %v1043
        %v1070 = vunpack.c.l.b16 %v1057
        %v1071 = vpack.c.b16 %v1064, %v1063
        %v1072 = vpack.c.b16 %v1066, %v1065
        %v1073 = vpack.c.b16 %v1068, %v1067
        %v1074 = vpack.c.b16 %v1070, %v1069
        %v1079 = vunpack.c.l.b16 %v1059
        %v1080 = vunpack.c.l.b16 %v1060
        %v1081 = vunpack.c.l.b16 %v1061
        %v1082 = vunpack.c.l.b16 %v1062
        %v1083 = vpack.c.b16 %v1080, %v1079
        %v1084 = vpack.c.b16 %v1082, %v1081
        %v1088 = vsel %vm553, %v1071, 0
        %v1091 = vsel %vm553, %v1072, 0
        %v1094 = vsel %vm553, %v1073, 0
        %v1097 = vsel %vm553, %v1074, 0
        %1099 = vmatprep.subr.bf16.mxu0 0
        %1100 = vmatpush1.bf16.msra.mxu0 0
        %1101 = vmatprep.subr.bf16.mxu0 0
        %1102 = vmatpush1.bf16.msra.mxu0 0
        %1103 = vmatprep.subr.bf16.mxu0 0
        %1104 = vmatpush1.bf16.msra.mxu0 0
        %1105 = vmatprep.subr.bf16.mxu0 0
        %1106 = vmatpush1.bf16.msra.mxu0 0
        %1107 = vmatprep.subr.bf16.mxu0 0
        %1108 = vmatpush1.bf16.msra.mxu0 0
        %1109 = vmatprep.subr.bf16.mxu0 0
        %1110 = vmatpush1.bf16.msra.mxu0 0
        %1111 = vmatprep.subr.bf16.mxu0 0
        %1112 = vmatpush1.bf16.msra.mxu0 %v1084
        %1113 = vmatprep.subr.bf16.mxu0 0
        %1114 = vmatpush1.bf16.msra.mxu0 %v1083
        %1115 = vmatprep.subr.bf16.mxu0 0
        %1116 = vmatpush2.bf16.msra.mxu0 0
        %1117 = vmatprep.subr.bf16.mxu0 0
        %1118 = vmatpush2.bf16.msra.mxu0 0
        %1119 = vmatprep.subr.bf16.mxu0 0
        %1120 = vmatpush2.bf16.msra.mxu0 0
        %1121 = vmatprep.subr.bf16.mxu0 0
        %1122 = vmatpush2.bf16.msra.mxu0 0
        %1123 = vmatprep.subr.bf16.mxu0 0
        %1124 = vmatpush2.bf16.msra.mxu0 0
        %1125 = vmatprep.subr.bf16.mxu0 0
        %1126 = vmatpush2.bf16.msra.mxu0 0
        %1127 = vmatprep.subr.bf16.mxu0 0
        %1128 = vmatpush2.bf16.msra.mxu0 0
        %1129 = vmatprep.subr.bf16.mxu0 0
        %1130 = vmatpush2.bf16.msra.mxu0 0
        %1131 = vmatprep.mubr.bf16.mxu0 0
        %1132 = vmatmul.mubr.bf16.gmra.mxu0 %v1088
        %v1133 = vpop.f32.mrf.mxu0
        %v1134 = vadd.f32 %v519, %v1133
        %v1135 = vpop.f32.mrf.mxu0
        %v1136 = vpop.f32.mrf.mxu0
        %v1137 = vadd.f32 %v519, %v1136
        %v1138 = vpop.f32.mrf.mxu0
        %1139 = vmatprep.mubr.bf16.mxu0 0
        %1140 = vmatmul.mubr.bf16.gmra.mxu0 %v1091
        %v1141 = vpop.f32.mrf.mxu0
        %v1142 = vadd.f32 %v519, %v1141
        %v1143 = vpop.f32.mrf.mxu0
        %v1144 = vpop.f32.mrf.mxu0
        %v1145 = vadd.f32 %v519, %v1144
        %v1146 = vpop.f32.mrf.mxu0
        %1147 = vmatprep.mubr.bf16.mxu0 0
        %1148 = vmatmul.mubr.bf16.gmra.mxu0 %v1094
        %v1149 = vpop.f32.mrf.mxu0
        %v1150 = vadd.f32 %v519, %v1149
        %v1151 = vpop.f32.mrf.mxu0
        %v1152 = vpop.f32.mrf.mxu0
        %v1153 = vadd.f32 %v519, %v1152
        %v1154 = vpop.f32.mrf.mxu0
        %1155 = vmatprep.mubr.bf16.mxu0 0
        %1156 = vmatmul.mubr.bf16.gmra.mxu0 %v1097
        %v1157 = vpop.f32.mrf.mxu0
        %v1158 = vadd.f32 %v519, %v1157
        %v1159 = vpop.f32.mrf.mxu0
        %v1160 = vpop.f32.mrf.mxu0
        %v1161 = vadd.f32 %v519, %v1160
        %v1162 = vpop.f32.mrf.mxu0
        %1163 = vdwg.mxu0
        %1172 = vrot.lane.b32.xlu0 %v1134, 4
        %v1173 = vpop.permute.xlu0 %1172
        %1174 = vrot.lane.b32.xlu0 %v1137, 4
        %v1175 = vpop.permute.xlu0 %1174
        %1176 = vrot.lane.b32.xlu0 %v1142, 4
        %v1177 = vpop.permute.xlu0 %1176
        %1178 = vrot.lane.b32.xlu0 %v1145, 4
        %v1179 = vpop.permute.xlu0 %1178
        %1180 = vrot.lane.b32.xlu0 %v1150, 4
        %v1181 = vpop.permute.xlu0 %1180
        %1182 = vrot.lane.b32.xlu0 %v1153, 4
        %v1183 = vpop.permute.xlu0 %1182
        %1184 = vrot.lane.b32.xlu0 %v1158, 4
        %v1185 = vpop.permute.xlu0 %1184
        %1186 = vrot.lane.b32.xlu0 %v1161, 4
        %v1187 = vpop.permute.xlu0 %1186
        %vm1196 = vcmask 31744
        %v1197 = vsel %vm1196, %v601, %v1173
        %v1198 = vsel %vm1196, %v604, %v1175
        %v1199 = vsel %vm1196, %v609, %v1177
        %v1200 = vsel %vm1196, %v612, %v1179
        %v1201 = vsel %vm1196, %v617, %v1181
        %v1202 = vsel %vm1196, %v620, %v1183
        %v1203 = vsel %vm1196, %v625, %v1185
        %v1204 = vsel %vm1196, %v628, %v1187
        %v1205 = vpack.c.bf16 %v1197, %v1197
        %v1206 = vpack.c.bf16 %v1198, %v1198
        %v1207 = vpack.c.bf16 %v1199, %v1199
        %v1208 = vpack.c.bf16 %v1200, %v1200
        %v1209 = vpack.c.bf16 %v1201, %v1201
        %v1210 = vpack.c.bf16 %v1202, %v1202
        %v1211 = vpack.c.bf16 %v1203, %v1203
        %v1212 = vpack.c.bf16 %v1204, %v1204
        %vm1213 = vcmask 60416
        %1214 = vst.msk [vmem:[%s163] sm:$0xf] %vm1213, %v1205
        %1215 = vst.msk [vmem:[%s163 + $0x8] sm:$0xf] %vm1213, %v1206
        %1216 = vst.msk [vmem:[%s163 + $0x10] sm:$0xf] %vm1213, %v1207
        %1217 = vst.msk [vmem:[%s163 + $0x18] sm:$0xf] %vm1213, %v1208
        %1218 = vst.msk [vmem:[%s163 + $0x20] sm:$0xf] %vm1213, %v1209
        %1219 = vst.msk [vmem:[%s163 + $0x28] sm:$0xf] %vm1213, %v1210
        %1220 = vst.msk [vmem:[%s163 + $0x30] sm:$0xf] %vm1213, %v1211
        %1221 = vst.msk [vmem:[%s163 + $0x38] sm:$0xf] %vm1213, %v1212
        %v1222 = vld [vmem:[%s186] sm:$0xf]
        %v1223 = vld [vmem:[%s186 + $0x8] sm:$0xf]
        %v1224 = vld [vmem:[%s186 + $0x10] sm:$0xf]
        %v1225 = vld [vmem:[%s186 + $0x18] sm:$0xf]
        %v1226 = vld [vmem:[%s186 + $0x20] sm:$0xf]
        %v1227 = vld [vmem:[%s186 + $0x28] sm:$0xf]
        %v1228 = vld [vmem:[%s186 + $0x30] sm:$0xf]
        %v1229 = vld [vmem:[%s186 + $0x38] sm:$0xf]
        %v1230 = vld [vmem:[%s186 + $0x4] sm:$0x1]
        %v1231 = vld [vmem:[%s186 + $0xc] sm:$0x1]
        %v1232 = vld [vmem:[%s186 + $0x14] sm:$0x1]
        %v1233 = vld [vmem:[%s186 + $0x1c] sm:$0x1]
        %v1234 = vld [vmem:[%s186 + $0x24] sm:$0x1]
        %v1235 = vld [vmem:[%s186 + $0x2c] sm:$0x1]
        %v1236 = vld [vmem:[%s186 + $0x34] sm:$0x1]
        %v1237 = vld [vmem:[%s186 + $0x3c] sm:$0x1]
        %s1238 = scalar_lea.vmem %s168, 16
        %v1239 = vld [vmem:[%s1238] sm:$0xf]
        %v1240 = vld [vmem:[%s1238 + $0x8] sm:$0xf]
        %v1241 = vld [vmem:[%s1238 + $0x10] sm:$0xf]
        %v1242 = vld [vmem:[%s1238 + $0x18] sm:$0xf]
        %v1243 = vld [vmem:[%s1238 + $0x20] sm:$0xf]
        %v1244 = vld [vmem:[%s1238 + $0x28] sm:$0xf]
        %v1245 = vld [vmem:[%s1238 + $0x30] sm:$0xf]
        %v1246 = vld [vmem:[%s1238 + $0x38] sm:$0xf]
        %v1247 = vld [vmem:[%s1238 + $0x4] sm:$0x1]
        %v1248 = vld [vmem:[%s1238 + $0xc] sm:$0x1]
        %v1249 = vld [vmem:[%s1238 + $0x14] sm:$0x1]
        %v1250 = vld [vmem:[%s1238 + $0x1c] sm:$0x1]
        %v1251 = vld [vmem:[%s1238 + $0x24] sm:$0x1]
        %v1252 = vld [vmem:[%s1238 + $0x2c] sm:$0x1]
        %v1253 = vld [vmem:[%s1238 + $0x34] sm:$0x1]
        %v1254 = vld [vmem:[%s1238 + $0x3c] sm:$0x1]
        %v1271 = vunpack.c.l.b16 %v1222
        %v1272 = vunpack.c.l.b16 %v1230
        %v1273 = vunpack.c.l.b16 %v1223
        %v1274 = vunpack.c.l.b16 %v1231
        %v1275 = vunpack.c.l.b16 %v1224
        %v1276 = vunpack.c.l.b16 %v1232
        %v1277 = vunpack.c.l.b16 %v1225
        %v1278 = vunpack.c.l.b16 %v1233
        %v1279 = vunpack.c.l.b16 %v1226
        %v1280 = vunpack.c.l.b16 %v1234
        %v1281 = vunpack.c.l.b16 %v1227
        %v1282 = vunpack.c.l.b16 %v1235
        %v1283 = vunpack.c.l.b16 %v1228
        %v1284 = vunpack.c.l.b16 %v1236
        %v1285 = vunpack.c.l.b16 %v1229
        %v1286 = vunpack.c.l.b16 %v1237
        %v1287 = vpack.c.b16 %v1272, %v1271
        %v1288 = vpack.c.b16 %v1274, %v1273
        %v1289 = vpack.c.b16 %v1276, %v1275
        %v1290 = vpack.c.b16 %v1278, %v1277
        %v1291 = vpack.c.b16 %v1280, %v1279
        %v1292 = vpack.c.b16 %v1282, %v1281
        %v1293 = vpack.c.b16 %v1284, %v1283
        %v1294 = vpack.c.b16 %v1286, %v1285
        %v1296 = vshrl.u32 %v1287, 16
        %v1298 = vshll.u32 %v1287, 16
        %v1300 = vrot.slane %v1298, 1
        %v1301 = vor.u32 %v1296, %v1300
        %v1303 = vshrl.u32 %v1288, 16
        %v1305 = vshll.u32 %v1288, 16
        %v1307 = vrot.slane %v1305, 1
        %v1308 = vor.u32 %v1303, %v1307
        %v1310 = vshrl.u32 %v1289, 16
        %v1312 = vshll.u32 %v1289, 16
        %v1314 = vrot.slane %v1312, 1
        %v1315 = vor.u32 %v1310, %v1314
        %v1317 = vshrl.u32 %v1290, 16
        %v1319 = vshll.u32 %v1290, 16
        %v1321 = vrot.slane %v1319, 1
        %v1322 = vor.u32 %v1317, %v1321
        %v1324 = vshrl.u32 %v1291, 16
        %v1326 = vshll.u32 %v1291, 16
        %v1328 = vrot.slane %v1326, 1
        %v1329 = vor.u32 %v1324, %v1328
        %v1331 = vshrl.u32 %v1292, 16
        %v1333 = vshll.u32 %v1292, 16
        %v1335 = vrot.slane %v1333, 1
        %v1336 = vor.u32 %v1331, %v1335
        %v1338 = vshrl.u32 %v1293, 16
        %v1340 = vshll.u32 %v1293, 16
        %v1342 = vrot.slane %v1340, 1
        %v1343 = vor.u32 %v1338, %v1342
        %v1345 = vshrl.u32 %v1294, 16
        %v1347 = vshll.u32 %v1294, 16
        %v1349 = vrot.slane %v1347, 1
        %v1350 = vor.u32 %v1345, %v1349
        %1351 = vrot.lane.b32.xlu0 %v1301, 8
        %v1352 = vpop.permute.xlu0 %1351
        %1353 = vrot.lane.b32.xlu0 %v1308, 8
        %v1354 = vpop.permute.xlu0 %1353
        %1355 = vrot.lane.b32.xlu0 %v1315, 8
        %v1356 = vpop.permute.xlu0 %1355
        %1357 = vrot.lane.b32.xlu0 %v1322, 8
        %v1358 = vpop.permute.xlu0 %1357
        %1359 = vrot.lane.b32.xlu0 %v1329, 8
        %v1360 = vpop.permute.xlu0 %1359
        %1361 = vrot.lane.b32.xlu0 %v1336, 8
        %v1362 = vpop.permute.xlu0 %1361
        %1363 = vrot.lane.b32.xlu0 %v1343, 8
        %v1364 = vpop.permute.xlu0 %1363
        %1365 = vrot.lane.b32.xlu0 %v1350, 8
        %v1366 = vpop.permute.xlu0 %1365
        %v1375 = vunpack.c.l.b16 %v1239
        %v1376 = vunpack.c.l.b16 %v1240
        %v1377 = vunpack.c.l.b16 %v1241
        %v1378 = vunpack.c.l.b16 %v1242
        %v1379 = vunpack.c.l.b16 %v1243
        %v1380 = vunpack.c.l.b16 %v1244
        %v1381 = vunpack.c.l.b16 %v1245
        %v1382 = vunpack.c.l.b16 %v1246
        %v1383 = vpack.c.b16 %v1375, %v1375
        %v1384 = vpack.c.b16 %v1376, %v1376
        %v1385 = vpack.c.b16 %v1377, %v1377
        %v1386 = vpack.c.b16 %v1378, %v1378
        %v1387 = vpack.c.b16 %v1379, %v1379
        %v1388 = vpack.c.b16 %v1380, %v1380
        %v1389 = vpack.c.b16 %v1381, %v1381
        %v1390 = vpack.c.b16 %v1382, %v1382
        %1391 = vrot.lane.b32.xlu0 %v1383, 16
        %v1392 = vpop.permute.xlu0 %1391
        %1393 = vrot.lane.b32.xlu0 %v1384, 16
        %v1394 = vpop.permute.xlu0 %1393
        %1395 = vrot.lane.b32.xlu0 %v1385, 16
        %v1396 = vpop.permute.xlu0 %1395
        %1397 = vrot.lane.b32.xlu0 %v1386, 16
        %v1398 = vpop.permute.xlu0 %1397
        %1399 = vrot.lane.b32.xlu0 %v1387, 16
        %v1400 = vpop.permute.xlu0 %1399
        %1401 = vrot.lane.b32.xlu0 %v1388, 16
        %v1402 = vpop.permute.xlu0 %1401
        %1403 = vrot.lane.b32.xlu0 %v1389, 16
        %v1404 = vpop.permute.xlu0 %1403
        %1405 = vrot.lane.b32.xlu0 %v1390, 16
        %v1406 = vpop.permute.xlu0 %1405
        %v1415 = vunpack.c.l.b16 %v1247
        %v1416 = vunpack.c.l.b16 %v1248
        %v1417 = vunpack.c.l.b16 %v1249
        %v1418 = vunpack.c.l.b16 %v1250
        %v1419 = vunpack.c.l.b16 %v1251
        %v1420 = vunpack.c.l.b16 %v1252
        %v1421 = vunpack.c.l.b16 %v1253
        %v1422 = vunpack.c.l.b16 %v1254
        %v1423 = vpack.c.b16 %v1415, %v1375
        %v1424 = vpack.c.b16 %v1416, %v1376
        %v1425 = vpack.c.b16 %v1417, %v1377
        %v1426 = vpack.c.b16 %v1418, %v1378
        %v1427 = vpack.c.b16 %v1419, %v1379
        %v1428 = vpack.c.b16 %v1420, %v1380
        %v1429 = vpack.c.b16 %v1421, %v1381
        %v1430 = vpack.c.b16 %v1422, %v1382
        %v1432 = vshrl.u32 %v1423, 16
        %v1434 = vshll.u32 %v1423, 16
        %v1436 = vrot.slane %v1434, 1
        %v1437 = vor.u32 %v1432, %v1436
        %v1439 = vshrl.u32 %v1424, 16
        %v1441 = vshll.u32 %v1424, 16
        %v1443 = vrot.slane %v1441, 1
        %v1444 = vor.u32 %v1439, %v1443
        %v1446 = vshrl.u32 %v1425, 16
        %v1448 = vshll.u32 %v1425, 16
        %v1450 = vrot.slane %v1448, 1
        %v1451 = vor.u32 %v1446, %v1450
        %v1453 = vshrl.u32 %v1426, 16
        %v1455 = vshll.u32 %v1426, 16
        %v1457 = vrot.slane %v1455, 1
        %v1458 = vor.u32 %v1453, %v1457
        %v1460 = vshrl.u32 %v1427, 16
        %v1462 = vshll.u32 %v1427, 16
        %v1464 = vrot.slane %v1462, 1
        %v1465 = vor.u32 %v1460, %v1464
        %v1467 = vshrl.u32 %v1428, 16
        %v1469 = vshll.u32 %v1428, 16
        %v1471 = vrot.slane %v1469, 1
        %v1472 = vor.u32 %v1467, %v1471
        %v1474 = vshrl.u32 %v1429, 16
        %v1476 = vshll.u32 %v1429, 16
        %v1478 = vrot.slane %v1476, 1
        %v1479 = vor.u32 %v1474, %v1478
        %v1481 = vshrl.u32 %v1430, 16
        %v1483 = vshll.u32 %v1430, 16
        %v1485 = vrot.slane %v1483, 1
        %v1486 = vor.u32 %v1481, %v1485
        %1487 = vrot.lane.b32.xlu0 %v1437, 24
        %v1488 = vpop.permute.xlu0 %1487
        %1489 = vrot.lane.b32.xlu0 %v1444, 24
        %v1490 = vpop.permute.xlu0 %1489
        %1491 = vrot.lane.b32.xlu0 %v1451, 24
        %v1492 = vpop.permute.xlu0 %1491
        %1493 = vrot.lane.b32.xlu0 %v1458, 24
        %v1494 = vpop.permute.xlu0 %1493
        %1495 = vrot.lane.b32.xlu0 %v1465, 24
        %v1496 = vpop.permute.xlu0 %1495
        %1497 = vrot.lane.b32.xlu0 %v1472, 24
        %v1498 = vpop.permute.xlu0 %1497
        %1499 = vrot.lane.b32.xlu0 %v1479, 24
        %v1500 = vpop.permute.xlu0 %1499
        %1501 = vrot.lane.b32.xlu0 %v1486, 24
        %v1502 = vpop.permute.xlu0 %1501
        %v1505 = vsel %vm451, %v1222, %v1352
        %v1508 = vsel %vm451, %v1223, %v1354
        %v1511 = vsel %vm451, %v1224, %v1356
        %v1514 = vsel %vm451, %v1225, %v1358
        %v1517 = vsel %vm451, %v1226, %v1360
        %v1520 = vsel %vm451, %v1227, %v1362
        %v1523 = vsel %vm451, %v1228, %v1364
        %v1526 = vsel %vm451, %v1229, %v1366
        %v1528 = vsel %vm476, %v1505, %v1392
        %v1530 = vsel %vm476, %v1508, %v1394
        %v1532 = vsel %vm476, %v1511, %v1396
        %v1534 = vsel %vm476, %v1514, %v1398
        %v1536 = vsel %vm476, %v1517, %v1400
        %v1538 = vsel %vm476, %v1520, %v1402
        %v1540 = vsel %vm476, %v1523, %v1404
        %v1542 = vsel %vm476, %v1526, %v1406
        %v1544 = vsel %vm493, %v1528, %v1488
        %v1546 = vsel %vm493, %v1530, %v1490
        %v1548 = vsel %vm493, %v1532, %v1492
        %v1550 = vsel %vm493, %v1534, %v1494
        %v1552 = vsel %vm493, %v1536, %v1496
        %v1554 = vsel %vm493, %v1538, %v1498
        %v1556 = vsel %vm493, %v1540, %v1500
        %v1558 = vsel %vm493, %v1542, %v1502
        %s1559 = scalar_lea.vmem %s1, 32
        %v1560 = vld [vmem:[%s1559] sm:$0xf]
        %v1561 = vld [vmem:[%s1559 + $0x4] sm:$0xf]
        %v1562 = vld [vmem:[%s1559 + $0x8] sm:$0xf]
        %v1563 = vld [vmem:[%s1559 + $0xc] sm:$0xf]
        %v1564 = vld [vmem:[%s2] sm:$0x1]
        %v1566 = vlaneseq
        %v1567 = vshrl.u32 %v1566, 7
        %v1568 = vsub.s32 0, %v1567
        %v1569 = vrot.slane %v1564, %v1568
        %v1579 = vunpack.c.l.b16 %v1544
        %v1580 = vunpack.c.l.b16 %v1546
        %v1581 = vunpack.c.l.b16 %v1548
        %v1582 = vunpack.c.l.b16 %v1550
        %v1583 = vunpack.c.l.b16 %v1552
        %v1584 = vunpack.c.l.b16 %v1554
        %v1585 = vunpack.c.l.b16 %v1556
        %v1586 = vunpack.c.l.b16 %v1558
        %v1587 = vpack.c.b16 %v1580, %v1579
        %v1588 = vpack.c.b16 %v1582, %v1581
        %v1589 = vpack.c.b16 %v1584, %v1583
        %v1590 = vpack.c.b16 %v1586, %v1585
        %v1595 = vunpack.c.l.b16 %v1560
        %v1596 = vunpack.c.l.b16 %v1561
        %v1597 = vunpack.c.l.b16 %v1562
        %v1598 = vunpack.c.l.b16 %v1563
        %v1599 = vpack.c.b16 %v1596, %v1595
        %v1600 = vpack.c.b16 %v1598, %v1597
        %v1604 = vsel %vm553, %v1587, 0
        %v1607 = vsel %vm553, %v1588, 0
        %v1610 = vsel %vm553, %v1589, 0
        %v1613 = vsel %vm553, %v1590, 0
        %1615 = vmatprep.subr.bf16.mxu0 0
        %1616 = vmatpush1.bf16.msra.mxu0 0
        %1617 = vmatprep.subr.bf16.mxu0 0
        %1618 = vmatpush1.bf16.msra.mxu0 0
        %1619 = vmatprep.subr.bf16.mxu0 0
        %1620 = vmatpush1.bf16.msra.mxu0 0
        %1621 = vmatprep.subr.bf16.mxu0 0
        %1622 = vmatpush1.bf16.msra.mxu0 0
        %1623 = vmatprep.subr.bf16.mxu0 0
        %1624 = vmatpush1.bf16.msra.mxu0 0
        %1625 = vmatprep.subr.bf16.mxu0 0
        %1626 = vmatpush1.bf16.msra.mxu0 0
        %1627 = vmatprep.subr.bf16.mxu0 0
        %1628 = vmatpush1.bf16.msra.mxu0 %v1600
        %1629 = vmatprep.subr.bf16.mxu0 0
        %1630 = vmatpush1.bf16.msra.mxu0 %v1599
        %1631 = vmatprep.subr.bf16.mxu0 0
        %1632 = vmatpush2.bf16.msra.mxu0 0
        %1633 = vmatprep.subr.bf16.mxu0 0
        %1634 = vmatpush2.bf16.msra.mxu0 0
        %1635 = vmatprep.subr.bf16.mxu0 0
        %1636 = vmatpush2.bf16.msra.mxu0 0
        %1637 = vmatprep.subr.bf16.mxu0 0
        %1638 = vmatpush2.bf16.msra.mxu0 0
        %1639 = vmatprep.subr.bf16.mxu0 0
        %1640 = vmatpush2.bf16.msra.mxu0 0
        %1641 = vmatprep.subr.bf16.mxu0 0
        %1642 = vmatpush2.bf16.msra.mxu0 0
        %1643 = vmatprep.subr.bf16.mxu0 0
        %1644 = vmatpush2.bf16.msra.mxu0 0
        %1645 = vmatprep.subr.bf16.mxu0 0
        %1646 = vmatpush2.bf16.msra.mxu0 0
        %1647 = vmatprep.mubr.bf16.mxu0 0
        %1648 = vmatmul.mubr.bf16.gmra.mxu0 %v1604
        %v1649 = vpop.f32.mrf.mxu0
        %v1650 = vadd.f32 %v1569, %v1649
        %v1651 = vpop.f32.mrf.mxu0
        %v1652 = vpop.f32.mrf.mxu0
        %v1653 = vadd.f32 %v1569, %v1652
        %v1654 = vpop.f32.mrf.mxu0
        %1655 = vmatprep.mubr.bf16.mxu0 0
        %1656 = vmatmul.mubr.bf16.gmra.mxu0 %v1607
        %v1657 = vpop.f32.mrf.mxu0
        %v1658 = vadd.f32 %v1569, %v1657
        %v1659 = vpop.f32.mrf.mxu0
        %v1660 = vpop.f32.mrf.mxu0
        %v1661 = vadd.f32 %v1569, %v1660
        %v1662 = vpop.f32.mrf.mxu0
        %1663 = vmatprep.mubr.bf16.mxu0 0
        %1664 = vmatmul.mubr.bf16.gmra.mxu0 %v1610
        %v1665 = vpop.f32.mrf.mxu0
        %v1666 = vadd.f32 %v1569, %v1665
        %v1667 = vpop.f32.mrf.mxu0
        %v1668 = vpop.f32.mrf.mxu0
        %v1669 = vadd.f32 %v1569, %v1668
        %v1670 = vpop.f32.mrf.mxu0
        %1671 = vmatprep.mubr.bf16.mxu0 0
        %1672 = vmatmul.mubr.bf16.gmra.mxu0 %v1613
        %v1673 = vpop.f32.mrf.mxu0
        %v1674 = vadd.f32 %v1569, %v1673
        %v1675 = vpop.f32.mrf.mxu0
        %v1676 = vpop.f32.mrf.mxu0
        %v1677 = vadd.f32 %v1569, %v1676
        %v1678 = vpop.f32.mrf.mxu0
        %1679 = vdwg.mxu0
        %v1680 = vld [vmem:[%s186] sm:$0xe]
        %v1681 = vld [vmem:[%s186 + $0x8] sm:$0xe]
        %v1682 = vld [vmem:[%s186 + $0x10] sm:$0xe]
        %v1683 = vld [vmem:[%s186 + $0x18] sm:$0xe]
        %v1684 = vld [vmem:[%s186 + $0x20] sm:$0xe]
        %v1685 = vld [vmem:[%s186 + $0x28] sm:$0xe]
        %v1686 = vld [vmem:[%s186 + $0x30] sm:$0xe]
        %v1687 = vld [vmem:[%s186 + $0x38] sm:$0xe]
        %v1688 = vld [vmem:[%s1238] sm:$0xe]
        %v1689 = vld [vmem:[%s1238 + $0x8] sm:$0xe]
        %v1690 = vld [vmem:[%s1238 + $0x10] sm:$0xe]
        %v1691 = vld [vmem:[%s1238 + $0x18] sm:$0xe]
        %v1692 = vld [vmem:[%s1238 + $0x20] sm:$0xe]
        %v1693 = vld [vmem:[%s1238 + $0x28] sm:$0xe]
        %v1694 = vld [vmem:[%s1238 + $0x30] sm:$0xe]
        %v1695 = vld [vmem:[%s1238 + $0x38] sm:$0xe]
        %v1704 = vunpack.c.l.b16 %v1680
        %v1705 = vunpack.c.l.b16 %v1681
        %v1706 = vunpack.c.l.b16 %v1682
        %v1707 = vunpack.c.l.b16 %v1683
        %v1708 = vunpack.c.l.b16 %v1684
        %v1709 = vunpack.c.l.b16 %v1685
        %v1710 = vunpack.c.l.b16 %v1686
        %v1711 = vunpack.c.l.b16 %v1687
        %v1712 = vpack.c.b16 %v1272, %v1704
        %v1713 = vpack.c.b16 %v1274, %v1705
        %v1714 = vpack.c.b16 %v1276, %v1706
        %v1715 = vpack.c.b16 %v1278, %v1707
        %v1716 = vpack.c.b16 %v1280, %v1708
        %v1717 = vpack.c.b16 %v1282, %v1709
        %v1718 = vpack.c.b16 %v1284, %v1710
        %v1719 = vpack.c.b16 %v1286, %v1711
        %v1721 = vshrl.u32 %v1712, 16
        %v1723 = vshll.u32 %v1712, 16
        %v1725 = vrot.slane %v1723, 1
        %v1726 = vor.u32 %v1721, %v1725
        %v1728 = vshrl.u32 %v1713, 16
        %v1730 = vshll.u32 %v1713, 16
        %v1732 = vrot.slane %v1730, 1
        %v1733 = vor.u32 %v1728, %v1732
        %v1735 = vshrl.u32 %v1714, 16
        %v1737 = vshll.u32 %v1714, 16
        %v1739 = vrot.slane %v1737, 1
        %v1740 = vor.u32 %v1735, %v1739
        %v1742 = vshrl.u32 %v1715, 16
        %v1744 = vshll.u32 %v1715, 16
        %v1746 = vrot.slane %v1744, 1
        %v1747 = vor.u32 %v1742, %v1746
        %v1749 = vshrl.u32 %v1716, 16
        %v1751 = vshll.u32 %v1716, 16
        %v1753 = vrot.slane %v1751, 1
        %v1754 = vor.u32 %v1749, %v1753
        %v1756 = vshrl.u32 %v1717, 16
        %v1758 = vshll.u32 %v1717, 16
        %v1760 = vrot.slane %v1758, 1
        %v1761 = vor.u32 %v1756, %v1760
        %v1763 = vshrl.u32 %v1718, 16
        %v1765 = vshll.u32 %v1718, 16
        %v1767 = vrot.slane %v1765, 1
        %v1768 = vor.u32 %v1763, %v1767
        %v1770 = vshrl.u32 %v1719, 16
        %v1772 = vshll.u32 %v1719, 16
        %v1774 = vrot.slane %v1772, 1
        %v1775 = vor.u32 %v1770, %v1774
        %1776 = vrot.lane.b32.xlu0 %v1726, 8
        %v1777 = vpop.permute.xlu0 %1776
        %1778 = vrot.lane.b32.xlu0 %v1733, 8
        %v1779 = vpop.permute.xlu0 %1778
        %1780 = vrot.lane.b32.xlu0 %v1740, 8
        %v1781 = vpop.permute.xlu0 %1780
        %1782 = vrot.lane.b32.xlu0 %v1747, 8
        %v1783 = vpop.permute.xlu0 %1782
        %1784 = vrot.lane.b32.xlu0 %v1754, 8
        %v1785 = vpop.permute.xlu0 %1784
        %1786 = vrot.lane.b32.xlu0 %v1761, 8
        %v1787 = vpop.permute.xlu0 %1786
        %1788 = vrot.lane.b32.xlu0 %v1768, 8
        %v1789 = vpop.permute.xlu0 %1788
        %1790 = vrot.lane.b32.xlu0 %v1775, 8
        %v1791 = vpop.permute.xlu0 %1790
        %1792 = vrot.lane.b32.xlu0 %v1423, 16
        %v1793 = vpop.permute.xlu0 %1792
        %1794 = vrot.lane.b32.xlu0 %v1424, 16
        %v1795 = vpop.permute.xlu0 %1794
        %1796 = vrot.lane.b32.xlu0 %v1425, 16
        %v1797 = vpop.permute.xlu0 %1796
        %1798 = vrot.lane.b32.xlu0 %v1426, 16
        %v1799 = vpop.permute.xlu0 %1798
        %1800 = vrot.lane.b32.xlu0 %v1427, 16
        %v1801 = vpop.permute.xlu0 %1800
        %1802 = vrot.lane.b32.xlu0 %v1428, 16
        %v1803 = vpop.permute.xlu0 %1802
        %1804 = vrot.lane.b32.xlu0 %v1429, 16
        %v1805 = vpop.permute.xlu0 %1804
        %1806 = vrot.lane.b32.xlu0 %v1430, 16
        %v1807 = vpop.permute.xlu0 %1806
        %v1816 = vunpack.c.l.b16 %v1688
        %v1817 = vunpack.c.l.b16 %v1689
        %v1818 = vunpack.c.l.b16 %v1690
        %v1819 = vunpack.c.l.b16 %v1691
        %v1820 = vunpack.c.l.b16 %v1692
        %v1821 = vunpack.c.l.b16 %v1693
        %v1822 = vunpack.c.l.b16 %v1694
        %v1823 = vunpack.c.l.b16 %v1695
        %v1824 = vpack.c.b16 %v1415, %v1816
        %v1825 = vpack.c.b16 %v1416, %v1817
        %v1826 = vpack.c.b16 %v1417, %v1818
        %v1827 = vpack.c.b16 %v1418, %v1819
        %v1828 = vpack.c.b16 %v1419, %v1820
        %v1829 = vpack.c.b16 %v1420, %v1821
        %v1830 = vpack.c.b16 %v1421, %v1822
        %v1831 = vpack.c.b16 %v1422, %v1823
        %v1833 = vshrl.u32 %v1824, 16
        %v1835 = vshll.u32 %v1824, 16
        %v1837 = vrot.slane %v1835, 1
        %v1838 = vor.u32 %v1833, %v1837
        %v1840 = vshrl.u32 %v1825, 16
        %v1842 = vshll.u32 %v1825, 16
        %v1844 = vrot.slane %v1842, 1
        %v1845 = vor.u32 %v1840, %v1844
        %v1847 = vshrl.u32 %v1826, 16
        %v1849 = vshll.u32 %v1826, 16
        %v1851 = vrot.slane %v1849, 1
        %v1852 = vor.u32 %v1847, %v1851
        %v1854 = vshrl.u32 %v1827, 16
        %v1856 = vshll.u32 %v1827, 16
        %v1858 = vrot.slane %v1856, 1
        %v1859 = vor.u32 %v1854, %v1858
        %v1861 = vshrl.u32 %v1828, 16
        %v1863 = vshll.u32 %v1828, 16
        %v1865 = vrot.slane %v1863, 1
        %v1866 = vor.u32 %v1861, %v1865
        %v1868 = vshrl.u32 %v1829, 16
        %v1870 = vshll.u32 %v1829, 16
        %v1872 = vrot.slane %v1870, 1
        %v1873 = vor.u32 %v1868, %v1872
        %v1875 = vshrl.u32 %v1830, 16
        %v1877 = vshll.u32 %v1830, 16
        %v1879 = vrot.slane %v1877, 1
        %v1880 = vor.u32 %v1875, %v1879
        %v1882 = vshrl.u32 %v1831, 16
        %v1884 = vshll.u32 %v1831, 16
        %v1886 = vrot.slane %v1884, 1
        %v1887 = vor.u32 %v1882, %v1886
        %1888 = vrot.lane.b32.xlu0 %v1838, 24
        %v1889 = vpop.permute.xlu0 %1888
        %1890 = vrot.lane.b32.xlu0 %v1845, 24
        %v1891 = vpop.permute.xlu0 %1890
        %1892 = vrot.lane.b32.xlu0 %v1852, 24
        %v1893 = vpop.permute.xlu0 %1892
        %1894 = vrot.lane.b32.xlu0 %v1859, 24
        %v1895 = vpop.permute.xlu0 %1894
        %1896 = vrot.lane.b32.xlu0 %v1866, 24
        %v1897 = vpop.permute.xlu0 %1896
        %1898 = vrot.lane.b32.xlu0 %v1873, 24
        %v1899 = vpop.permute.xlu0 %1898
        %1900 = vrot.lane.b32.xlu0 %v1880, 24
        %v1901 = vpop.permute.xlu0 %1900
        %1902 = vrot.lane.b32.xlu0 %v1887, 24
        %v1903 = vpop.permute.xlu0 %1902
        %v1905 = vsel %vm451, %v1287, %v1777
        %v1907 = vsel %vm451, %v1288, %v1779
        %v1909 = vsel %vm451, %v1289, %v1781
        %v1911 = vsel %vm451, %v1290, %v1783
        %v1913 = vsel %vm451, %v1291, %v1785
        %v1915 = vsel %vm451, %v1292, %v1787
        %v1917 = vsel %vm451, %v1293, %v1789
        %v1919 = vsel %vm451, %v1294, %v1791
        %v1921 = vsel %vm476, %v1905, %v1793
        %v1923 = vsel %vm476, %v1907, %v1795
        %v1925 = vsel %vm476, %v1909, %v1797
        %v1927 = vsel %vm476, %v1911, %v1799
        %v1929 = vsel %vm476, %v1913, %v1801
        %v1931 = vsel %vm476, %v1915, %v1803
        %v1933 = vsel %vm476, %v1917, %v1805
        %v1935 = vsel %vm476, %v1919, %v1807
        %v1937 = vsel %vm493, %v1921, %v1889
        %v1939 = vsel %vm493, %v1923, %v1891
        %v1941 = vsel %vm493, %v1925, %v1893
        %v1943 = vsel %vm493, %v1927, %v1895
        %v1945 = vsel %vm493, %v1929, %v1897
        %v1947 = vsel %vm493, %v1931, %v1899
        %v1949 = vsel %vm493, %v1933, %v1901
        %v1951 = vsel %vm493, %v1935, %v1903
        %v1960 = vunpack.c.l.b16 %v1937
        %v1961 = vunpack.c.h.b16 %v1937
        %v1962 = vunpack.c.l.b16 %v1939
        %v1963 = vunpack.c.h.b16 %v1939
        %v1964 = vunpack.c.l.b16 %v1941
        %v1965 = vunpack.c.h.b16 %v1941
        %v1966 = vunpack.c.l.b16 %v1943
        %v1967 = vunpack.c.h.b16 %v1943
        %v1968 = vunpack.c.l.b16 %v1945
        %v1969 = vunpack.c.h.b16 %v1945
        %v1970 = vunpack.c.l.b16 %v1947
        %v1971 = vunpack.c.h.b16 %v1947
        %v1972 = vunpack.c.l.b16 %v1949
        %v1973 = vunpack.c.h.b16 %v1949
        %v1974 = vunpack.c.l.b16 %v1951
        %v1975 = vunpack.c.h.b16 %v1951
        %v1976 = vpack.c.b16 %v1960, %v1960
        %v1977 = vpack.c.b16 %v1961, %v1961
        %v1978 = vpack.c.b16 %v1962, %v1962
        %v1979 = vpack.c.b16 %v1963, %v1963
        %v1980 = vpack.c.b16 %v1964, %v1964
        %v1981 = vpack.c.b16 %v1965, %v1965
        %v1982 = vpack.c.b16 %v1966, %v1966
        %v1983 = vpack.c.b16 %v1967, %v1967
        %v1984 = vpack.c.b16 %v1968, %v1968
        %v1985 = vpack.c.b16 %v1969, %v1969
        %v1986 = vpack.c.b16 %v1970, %v1970
        %v1987 = vpack.c.b16 %v1971, %v1971
        %v1988 = vpack.c.b16 %v1972, %v1972
        %v1989 = vpack.c.b16 %v1973, %v1973
        %v1990 = vpack.c.b16 %v1974, %v1974
        %v1991 = vpack.c.b16 %v1975, %v1975
        %v1993 = vshrl.u32 %v1976, 16
        %v1995 = vrot.slane %v1993, 4
        %v1996 = vshll.u32 %v1976, 16
        %v1998 = vrot.slane %v1996, 5
        %v1999 = vor.u32 %v1995, %v1998
        %v2000 = vrot.slane %v1999, 4
        %v2002 = vshll.u32 %v1977, 16
        %v2004 = vrot.slane %v2002, 5
        %v2005 = vsel %vm945, %v2000, %v2004
        %v2007 = vshrl.u32 %v1978, 16
        %v2009 = vrot.slane %v2007, 4
        %v2010 = vshll.u32 %v1978, 16
        %v2012 = vrot.slane %v2010, 5
        %v2013 = vor.u32 %v2009, %v2012
        %v2014 = vrot.slane %v2013, 4
        %v2016 = vshll.u32 %v1979, 16
        %v2018 = vrot.slane %v2016, 5
        %v2019 = vsel %vm945, %v2014, %v2018
        %v2021 = vshrl.u32 %v1980, 16
        %v2023 = vrot.slane %v2021, 4
        %v2024 = vshll.u32 %v1980, 16
        %v2026 = vrot.slane %v2024, 5
        %v2027 = vor.u32 %v2023, %v2026
        %v2028 = vrot.slane %v2027, 4
        %v2030 = vshll.u32 %v1981, 16
        %v2032 = vrot.slane %v2030, 5
        %v2033 = vsel %vm945, %v2028, %v2032
        %v2035 = vshrl.u32 %v1982, 16
        %v2037 = vrot.slane %v2035, 4
        %v2038 = vshll.u32 %v1982, 16
        %v2040 = vrot.slane %v2038, 5
        %v2041 = vor.u32 %v2037, %v2040
        %v2042 = vrot.slane %v2041, 4
        %v2044 = vshll.u32 %v1983, 16
        %v2046 = vrot.slane %v2044, 5
        %v2047 = vsel %vm945, %v2042, %v2046
        %v2049 = vshrl.u32 %v1984, 16
        %v2051 = vrot.slane %v2049, 4
        %v2052 = vshll.u32 %v1984, 16
        %v2054 = vrot.slane %v2052, 5
        %v2055 = vor.u32 %v2051, %v2054
        %v2056 = vrot.slane %v2055, 4
        %v2058 = vshll.u32 %v1985, 16
        %v2060 = vrot.slane %v2058, 5
        %v2061 = vsel %vm945, %v2056, %v2060
        %v2063 = vshrl.u32 %v1986, 16
        %v2065 = vrot.slane %v2063, 4
        %v2066 = vshll.u32 %v1986, 16
        %v2068 = vrot.slane %v2066, 5
        %v2069 = vor.u32 %v2065, %v2068
        %v2070 = vrot.slane %v2069, 4
        %v2072 = vshll.u32 %v1987, 16
        %v2074 = vrot.slane %v2072, 5
        %v2075 = vsel %vm945, %v2070, %v2074
        %v2077 = vshrl.u32 %v1988, 16
        %v2079 = vrot.slane %v2077, 4
        %v2080 = vshll.u32 %v1988, 16
        %v2082 = vrot.slane %v2080, 5
        %v2083 = vor.u32 %v2079, %v2082
        %v2084 = vrot.slane %v2083, 4
        %v2086 = vshll.u32 %v1989, 16
        %v2088 = vrot.slane %v2086, 5
        %v2089 = vsel %vm945, %v2084, %v2088
        %v2091 = vshrl.u32 %v1990, 16
        %v2093 = vrot.slane %v2091, 4
        %v2094 = vshll.u32 %v1990, 16
        %v2096 = vrot.slane %v2094, 5
        %v2097 = vor.u32 %v2093, %v2096
        %v2098 = vrot.slane %v2097, 4
        %v2100 = vshll.u32 %v1991, 16
        %v2102 = vrot.slane %v2100, 5
        %v2103 = vsel %vm945, %v2098, %v2102
        %s2104 = scalar_lea.vmem %s1, 48
        %v2105 = vld [vmem:[%s2104] sm:$0xf]
        %v2106 = vld [vmem:[%s2104 + $0x4] sm:$0xf]
        %v2107 = vld [vmem:[%s2104 + $0x8] sm:$0xf]
        %v2108 = vld [vmem:[%s2104 + $0xc] sm:$0xf]
        %v2109 = vunpack.c.l.b16 %v2005
        %v2110 = vunpack.c.l.b16 %v2019
        %v2111 = vunpack.c.l.b16 %v2033
        %v2112 = vunpack.c.l.b16 %v2047
        %v2113 = vunpack.c.l.b16 %v2061
        %v2114 = vunpack.c.l.b16 %v2075
        %v2115 = vunpack.c.l.b16 %v2089
        %v2116 = vunpack.c.l.b16 %v2103
        %v2117 = vpack.c.b16 %v2110, %v2109
        %v2118 = vpack.c.b16 %v2112, %v2111
        %v2119 = vpack.c.b16 %v2114, %v2113
        %v2120 = vpack.c.b16 %v2116, %v2115
        %v2125 = vunpack.c.l.b16 %v2105
        %v2126 = vunpack.c.l.b16 %v2106
        %v2127 = vunpack.c.l.b16 %v2107
        %v2128 = vunpack.c.l.b16 %v2108
        %v2129 = vpack.c.b16 %v2126, %v2125
        %v2130 = vpack.c.b16 %v2128, %v2127
        %v2134 = vsel %vm553, %v2117, 0
        %v2137 = vsel %vm553, %v2118, 0
        %v2140 = vsel %vm553, %v2119, 0
        %v2143 = vsel %vm553, %v2120, 0
        %2145 = vmatprep.subr.bf16.mxu0 0
        %2146 = vmatpush1.bf16.msra.mxu0 0
        %2147 = vmatprep.subr.bf16.mxu0 0
        %2148 = vmatpush1.bf16.msra.mxu0 0
        %2149 = vmatprep.subr.bf16.mxu0 0
        %2150 = vmatpush1.bf16.msra.mxu0 0
        %2151 = vmatprep.subr.bf16.mxu0 0
        %2152 = vmatpush1.bf16.msra.mxu0 0
        %2153 = vmatprep.subr.bf16.mxu0 0
        %2154 = vmatpush1.bf16.msra.mxu0 0
        %2155 = vmatprep.subr.bf16.mxu0 0
        %2156 = vmatpush1.bf16.msra.mxu0 0
        %2157 = vmatprep.subr.bf16.mxu0 0
        %2158 = vmatpush1.bf16.msra.mxu0 %v2130
        %2159 = vmatprep.subr.bf16.mxu0 0
        %2160 = vmatpush1.bf16.msra.mxu0 %v2129
        %2161 = vmatprep.subr.bf16.mxu0 0
        %2162 = vmatpush2.bf16.msra.mxu0 0
        %2163 = vmatprep.subr.bf16.mxu0 0
        %2164 = vmatpush2.bf16.msra.mxu0 0
        %2165 = vmatprep.subr.bf16.mxu0 0
        %2166 = vmatpush2.bf16.msra.mxu0 0
        %2167 = vmatprep.subr.bf16.mxu0 0
        %2168 = vmatpush2.bf16.msra.mxu0 0
        %2169 = vmatprep.subr.bf16.mxu0 0
        %2170 = vmatpush2.bf16.msra.mxu0 0
        %2171 = vmatprep.subr.bf16.mxu0 0
        %2172 = vmatpush2.bf16.msra.mxu0 0
        %2173 = vmatprep.subr.bf16.mxu0 0
        %2174 = vmatpush2.bf16.msra.mxu0 0
        %2175 = vmatprep.subr.bf16.mxu0 0
        %2176 = vmatpush2.bf16.msra.mxu0 0
        %2177 = vmatprep.mubr.bf16.mxu0 0
        %2178 = vmatmul.mubr.bf16.gmra.mxu0 %v2134
        %v2179 = vpop.f32.mrf.mxu0
        %v2180 = vadd.f32 %v1569, %v2179
        %v2181 = vpop.f32.mrf.mxu0
        %v2182 = vpop.f32.mrf.mxu0
        %v2183 = vadd.f32 %v1569, %v2182
        %v2184 = vpop.f32.mrf.mxu0
        %2185 = vmatprep.mubr.bf16.mxu0 0
        %2186 = vmatmul.mubr.bf16.gmra.mxu0 %v2137
        %v2187 = vpop.f32.mrf.mxu0
        %v2188 = vadd.f32 %v1569, %v2187
        %v2189 = vpop.f32.mrf.mxu0
        %v2190 = vpop.f32.mrf.mxu0
        %v2191 = vadd.f32 %v1569, %v2190
        %v2192 = vpop.f32.mrf.mxu0
        %2193 = vmatprep.mubr.bf16.mxu0 0
        %2194 = vmatmul.mubr.bf16.gmra.mxu0 %v2140
        %v2195 = vpop.f32.mrf.mxu0
        %v2196 = vadd.f32 %v1569, %v2195
        %v2197 = vpop.f32.mrf.mxu0
        %v2198 = vpop.f32.mrf.mxu0
        %v2199 = vadd.f32 %v1569, %v2198
        %v2200 = vpop.f32.mrf.mxu0
        %2201 = vmatprep.mubr.bf16.mxu0 0
        %2202 = vmatmul.mubr.bf16.gmra.mxu0 %v2143
        %v2203 = vpop.f32.mrf.mxu0
        %v2204 = vadd.f32 %v1569, %v2203
        %v2205 = vpop.f32.mrf.mxu0
        %v2206 = vpop.f32.mrf.mxu0
        %v2207 = vadd.f32 %v1569, %v2206
        %v2208 = vpop.f32.mrf.mxu0
        %2209 = vdwg.mxu0
        %2218 = vrot.lane.b32.xlu0 %v2180, 4
        %v2219 = vpop.permute.xlu0 %2218
        %2220 = vrot.lane.b32.xlu0 %v2183, 4
        %v2221 = vpop.permute.xlu0 %2220
        %2222 = vrot.lane.b32.xlu0 %v2188, 4
        %v2223 = vpop.permute.xlu0 %2222
        %2224 = vrot.lane.b32.xlu0 %v2191, 4
        %v2225 = vpop.permute.xlu0 %2224
        %2226 = vrot.lane.b32.xlu0 %v2196, 4
        %v2227 = vpop.permute.xlu0 %2226
        %2228 = vrot.lane.b32.xlu0 %v2199, 4
        %v2229 = vpop.permute.xlu0 %2228
        %2230 = vrot.lane.b32.xlu0 %v2204, 4
        %v2231 = vpop.permute.xlu0 %2230
        %2232 = vrot.lane.b32.xlu0 %v2207, 4
        %v2233 = vpop.permute.xlu0 %2232
        %v2242 = vsel %vm1196, %v1650, %v2219
        %v2243 = vsel %vm1196, %v1653, %v2221
        %v2244 = vsel %vm1196, %v1658, %v2223
        %v2245 = vsel %vm1196, %v1661, %v2225
        %v2246 = vsel %vm1196, %v1666, %v2227
        %v2247 = vsel %vm1196, %v1669, %v2229
        %v2248 = vsel %vm1196, %v1674, %v2231
        %v2249 = vsel %vm1196, %v1677, %v2233
        %v2250 = vpack.c.bf16 %v2242, %v2242
        %v2251 = vpack.c.bf16 %v2243, %v2243
        %v2252 = vpack.c.bf16 %v2244, %v2244
        %v2253 = vpack.c.bf16 %v2245, %v2245
        %v2254 = vpack.c.bf16 %v2246, %v2246
        %v2255 = vpack.c.bf16 %v2247, %v2247
        %v2256 = vpack.c.bf16 %v2248, %v2248
        %v2257 = vpack.c.bf16 %v2249, %v2249
        %s2258 = scalar_lea.vmem %s163, 4 [#allocation2]
        %2259 = vst.msk [vmem:[%s2258] sm:$0xf] %vm1213, %v2250
        %2260 = vst.msk [vmem:[%s2258 + $0x8] sm:$0xf] %vm1213, %v2251
        %2261 = vst.msk [vmem:[%s2258 + $0x10] sm:$0xf] %vm1213, %v2252
        %2262 = vst.msk [vmem:[%s2258 + $0x18] sm:$0xf] %vm1213, %v2253
        %2263 = vst.msk [vmem:[%s2258 + $0x20] sm:$0xf] %vm1213, %v2254
        %2264 = vst.msk [vmem:[%s2258 + $0x28] sm:$0xf] %vm1213, %v2255
        %2265 = vst.msk [vmem:[%s2258 + $0x30] sm:$0xf] %vm1213, %v2256
        %2266 = vst.msk [vmem:[%s2258 + $0x38] sm:$0xf] %vm1213, %v2257
        %s2267 = sand.u32 %s93, 1
        %s2268 = scalar_lea.sflag [#allocation3], %s2267
        %s2269 = sand.u32 %s93, 1
        %s2270 = smul.addr %s2269, 64
        %s2271 = scalar_lea.vmem [#allocation2], %s2270
        // Predicated region
        $region33: #{tpu_custom_call.1} parent=31 // pred_check
          %p2272 = pneg %p103
        $region34: #{tpu_custom_call.1} parent=31 // pred_check_branch
          %2274 = sbr.rel (%p2272) target = $region36
        $region35: #{tpu_custom_call.1} parent=31 // pred_region
          %s2276 = ssub.s32 1024, 1024
          %2277 = vsyncadd %s2268, %s2276
          %s2278 = smul.addr %s17, 16
          %s2279 = smul.addr %s2278, 64
          %s2280 = scalar_lea.hbm %s3, %s2279
          %s2281 = sshll.u32 %s2271, 4
          %s2282 = int_to_ptr.vmem [resolvable:$true] %s2281
          %2287 = dma.vmem_to_hbm [thread:$0]  %s2282, 1024, %s2280, %s2268, 64, 64, 4
        $region36: #{tpu_custom_call.1} parent=31 // pred_fallthru
          _
      $region32: #{tpu_custom_call.1} parent=5 // pred_fallthru
        _
      %p2288 = scmp.le.s32.totalorder 2, %s12
      // Predicated region
      $region37: #{tpu_custom_call.1} parent=5 // pred_check
        %p2289 = pneg %p2288
      $region38: #{tpu_custom_call.1} parent=5 // pred_check_branch
        %2291 = sbr.rel (%p2289) target = $region40
      $region39: #{tpu_custom_call.1} parent=5 // pred_region
        %s2292 = ssub.s32 %s12, 2
        // Predicated region
        $region41: #{tpu_custom_call.1} parent=39 // pred_check
          %p2293 = pneg %p109
        $region42: #{tpu_custom_call.1} parent=39 // pred_check_branch
          %2295 = sbr.rel (%p2293) target = $region44
        $region43: #{tpu_custom_call.1} parent=39 // pred_region
          %s2296 = sand.u32 %s94, 1
          %s2297 = scalar_lea.sflag [#allocation3], %s2296
          %s2298 = sand.u32 %s94, 1
          %s2299 = smul.addr %s2298, 64
          %s2300 = scalar_lea.vmem [#allocation2], %s2299
          %2301 = dma.done %s2297, 1024
        $region44: #{tpu_custom_call.1} parent=39 // pred_fallthru
          _
      $region40: #{tpu_custom_call.1} parent=5 // pred_fallthru
        _
    $region6: #{tpu_custom_call.1} parent=1 // loop_footer
      %s16 = sadd.s32 1, %s12
    $region7: #{tpu_custom_call.1} parent=1 // loop_footer_branch
      %11 = sbr.rel target = $region3
    $region8: #{tpu_custom_call.1} parent=1 // loop_exit
      _
    %2302 = vsyncpa [#allocation3], 1
    %s2303 = scalar_lea.sflag [#allocation3], 1
    %2304 = vsyncpa %s2303, 1

</llo_original>
